<compile_context>
chip_gen: v6e
topology: v6e:2x2x1
jax: 0.10.0
libtpu: 0.0.40
codegen_flags: <defaults>
</compile_context>

<pallas_src>
import functools
import math

import jax
import jax.numpy as jnp
from jax.experimental import pallas as pl
from jax.experimental.pallas import tpu as pltpu


# ---------------------------------------------------------------------------
# Kernel
# ---------------------------------------------------------------------------
def _maxpool2x2_kernel(x_ref, o_ref, *, toh, four_w, in_2d, out_2d):
    """2x2/2 max-pool over one block.

    Logical block is (TB, TOH, 4*OW): lanes [0, 2*OW) are input row 2r and
    lanes [2*OW, 4*OW) are input row 2r+1.  If in_2d/out_2d the block was
    handed over lane-dense as (TB, TOH*4*OW) / (TB, TOH*OW); the un/re-collapse
    is a VMEM-local relayout hidden behind the HBM DMAs.
    """
    w = four_w // 2
    ow = w // 2

    x = x_ref[...]
    tb = x.shape[0]
    if in_2d:
        x = x.reshape(tb, toh, four_w)
    rows = x.shape[1]

    # Vertical (H) reduction: the two rows of every 2x2 window are the two
    # contiguous lane halves -> plain elementwise max on the VPU.
    y = jnp.maximum(x[:, :, :w], x[:, :, w:])            # (TB, rows, 2*OW)

    # Horizontal (W) reduction: pair adjacent lanes (VMEM-local relayout).
    y4 = y.reshape(tb, rows, ow, 2)
    y = jnp.maximum(y4[..., 0], y4[..., 1])              # (TB, rows, OW)

    if out_2d:
        y = y.reshape(tb, rows * ow)                     # lane-dense store
    o_ref[...] = y


# ---------------------------------------------------------------------------
# Wrapper
# ---------------------------------------------------------------------------
def _round_up(a, m):
    return ((a + m - 1) // m) * m


def _vmem_capacity_bytes():
    """Physical VMEM capacity; conservative (v7x = 64 MiB) fallback."""
    try:
        cap = getattr(pltpu.get_tpu_info(), "vmem_capacity_bytes", None)
        if cap:
            return int(cap)
    except Exception:
        pass
    return 64 * 1024 * 1024


def maxpool2x2(x_nchw, *, target_block_bytes=8 * 1024 * 1024):
    """MaxPool2d(2, 2) over an NCHW tensor, matching torch (ceil_mode=False)."""
    n, c, h, w = x_nchw.shape
    oh, ow = h // 2, w // 2
    if oh == 0 or ow == 0:
        raise ValueError("spatial dims must be >= 2 for a 2x2/2 max pool")

    # ceil_mode=False semantics: floor (crop) odd spatial dims.  For even dims
    # this slice is a no-op; for odd dims it costs one extra HBM pass.
    x = x_nchw[:, :, : 2 * oh, : 2 * ow]

    dtype = x.dtype
    itemsize = x.dtype.itemsize
    sublane = {4: 8, 2: 16, 1: 32}.get(itemsize, 8)      # dtype-aware packing

    b = n * c
    four_w = 4 * ow

    # Lane-dense presentation (biggest measured lever): collapse the output to
    # 2D whenever OW is not already lane-dense; collapse the input too when a
    # folded row is narrower than one vreg row.
    out_2d = (ow % 128) != 0
    in_2d = four_w < 128

    # ---- TOH step: sublane granularity + 128-lane divisibility for any
    # ---- collapsed axis (full-extent blocks are exempt from the rule).
    step = sublane
    if in_2d:
        step = math.lcm(step, 128 // math.gcd(four_w, 128))
    if out_2d:
        step = math.lcm(step, 128 // math.gcd(ow, 128))

    row_bytes_in = four_w * itemsize
    if step >= oh:
        toh = oh                                          # single full-height block
    else:
        want_rows = max(step, target_block_bytes // max(row_bytes_in, 1))
        toh = min((want_rows // step) * step, (oh // step) * step)
        toh = max(toh, step)

    # ---- TB: when any axis is collapsed to 2D, TB is the second-minor block
    # ---- dim and must be a multiple of the sublane count (or the full B).
    tb_needs_align = in_2d or out_2d

    def _legal_tb(t):
        t = max(1, min(t, b))
        if not tb_needs_align:
            return t
        if b <= sublane or t >= b:
            return b
        return max(sublane, (t // sublane) * sublane)

    per_image_bytes = toh * four_w * itemsize
    tb = _legal_tb(max(1, target_block_bytes // max(per_image_bytes, 1)))
    min_tb = _legal_tb(1)

    def _grid_steps(tb_, toh_):
        return pl.cdiv(b, tb_) * pl.cdiv(oh, toh_)

    # Guarantee a few grid steps (megacore sharding on v7x + DMA overlap).
    while _grid_steps(tb, toh) < 4 and tb > min_tb:
        tb = _legal_tb(tb // 2)
    while _grid_steps(tb, toh) < 2 and toh > step and step < oh:
        toh = max(step, ((toh // 2) // step) * step)

    # ---- VMEM accounting on *padded* footprints (lanes->128, sublanes->pack).
    def _padded_bytes(tb_, toh_):
        if in_2d:
            in_b = _round_up(tb_, sublane) * _round_up(toh_ * four_w, 128) * itemsize
        else:
            in_b = tb_ * _round_up(toh_, sublane) * _round_up(four_w, 128) * itemsize
        if out_2d:
            out_b = _round_up(tb_, sublane) * _round_up(toh_ * ow, 128) * itemsize
        else:
            out_b = tb_ * _round_up(toh_, sublane) * _round_up(ow, 128) * itemsize
        return in_b, out_b

    vmem_cap = _vmem_capacity_bytes()
    vmem_limit = max(min(vmem_cap * 5 // 8, vmem_cap - (8 << 20)), 16 << 20)

    def _needed(tb_, toh_):
        in_b, out_b = _padded_bytes(tb_, toh_)
        # double-buffered pipeline blocks + in-kernel temporaries + slack
        return 2 * (in_b + out_b) + (3 * in_b) // 2 + (4 << 20)

    while _needed(tb, toh) > vmem_limit and (
            tb > min_tb or (toh > step and step < oh)):
        if tb > min_tb:
            tb = _legal_tb(tb // 2)
        else:
            toh = max(step, ((toh // 2) // step) * step)

    grid = (pl.cdiv(b, tb), pl.cdiv(oh, toh))

    # ---- Views and BlockSpecs (all reshapes below are contiguous / free).
    if in_2d:
        x_in = x.reshape(b, oh * four_w)
        in_spec = pl.BlockSpec((tb, toh * four_w), lambda i, j: (i, j))
    else:
        x_in = x.reshape(b, oh, four_w)
        in_spec = pl.BlockSpec((tb, toh, four_w), lambda i, j: (i, j, 0))

    if out_2d:
        out_shape = jax.ShapeDtypeStruct((b, oh * ow), dtype)
        out_spec = pl.BlockSpec((tb, toh * ow), lambda i, j: (i, j))
    else:
        out_shape = jax.ShapeDtypeStruct((b, oh, ow), dtype)
        out_spec = pl.BlockSpec((tb, toh, ow), lambda i, j: (i, j, 0))

    cost = pl.CostEstimate(
        flops=3 * b * oh * ow,
        transcendentals=0,
        bytes_accessed=(b * oh * four_w + b * oh * ow) * itemsize,
    )

    kernel = functools.partial(
        _maxpool2x2_kernel, toh=toh, four_w=four_w, in_2d=in_2d, out_2d=out_2d)

    out = pl.pallas_call(
        kernel,
        out_shape=out_shape,
        grid=grid,
        in_specs=[in_spec],
        out_specs=out_spec,
        compiler_params=pltpu.CompilerParams(
            dimension_semantics=("parallel", "parallel"),
            vmem_limit_bytes=int(vmem_limit),
        ),
        cost_estimate=cost,
    )(x_in)

    # Free reshape back to the NCHW output layout.
    return out.reshape(n, c, oh, ow)


if __name__ == "__main__":
    key = jax.random.PRNGKey(0)
    x = jax.random.normal(key, (2, 4, 16, 16), dtype=jnp.float32)  # NCHW

    out = maxpool2x2(x)
    out = jax.block_until_ready(out)

    # Reference: exact MaxPool2d(2, 2) semantics.
    n, c, h, w = x.shape
    ref = jnp.max(x.reshape(n, c, h // 2, 2, w // 2, 2), axis=(3, 5))

    assert out.shape == (n, c, h // 2, w // 2), out.shape
    assert out.dtype == x.dtype
    assert jnp.allclose(out, ref), "mismatch vs reference max-pool"
    print("KERNEL_OK")
</pallas_src>

<mosaic_0001>
module attributes {stable_mosaic.version = 11 : i64} {
  func.func @_maxpool2x2_kernel(%arg0: i32, %arg1: i32, %arg2: memref<8x256xf32, #tpu.memory_space<vmem>>, %arg3: memref<8x64xf32, #tpu.memory_space<vmem>>) attributes {dimension_semantics = [#tpu.dimension_semantics<parallel>, #tpu.dimension_semantics<parallel>], iteration_bounds = array<i64: 1, 1>, scalar_prefetch = 0 : i64, scratch_operands = 0 : i64, tpu.core_type = #tpu.core_type<tc>, window_params = [{transform_indices = @transform_0, window_bounds = array<i64: 8, 256>}, {transform_indices = @transform_1, window_bounds = array<i64: 8, 64>}]} {
    %c0 = arith.constant 0 : index
    %c0_0 = arith.constant 0 : index
    %0 = vector.load %arg2[%c0, %c0_0] : memref<8x256xf32, #tpu.memory_space<vmem>>, vector<8x256xf32>
    %1 = vector.shape_cast %0 : vector<8x256xf32> to vector<8x8x32xf32>
    %2 = vector.extract_strided_slice %1 {offsets = [0, 0, 0], sizes = [8, 8, 16], strides = [1, 1, 1]} : vector<8x8x32xf32> to vector<8x8x16xf32>
    %3 = vector.extract_strided_slice %1 {offsets = [0, 0, 16], sizes = [8, 8, 16], strides = [1, 1, 1]} : vector<8x8x32xf32> to vector<8x8x16xf32>
    %4 = arith.maximumf %2, %3 : vector<8x8x16xf32>
    %5 = vector.shape_cast %4 : vector<8x8x16xf32> to vector<8x8x8x2xf32>
    %6 = vector.extract_strided_slice %5 {offsets = [0, 0, 0, 0], sizes = [8, 8, 8, 1], strides = [1, 1, 1, 1]} : vector<8x8x8x2xf32> to vector<8x8x8x1xf32>
    %7 = vector.shape_cast %6 : vector<8x8x8x1xf32> to vector<8x8x8xf32>
    %8 = vector.extract_strided_slice %5 {offsets = [0, 0, 0, 1], sizes = [8, 8, 8, 1], strides = [1, 1, 1, 1]} : vector<8x8x8x2xf32> to vector<8x8x8x1xf32>
    %9 = vector.shape_cast %8 : vector<8x8x8x1xf32> to vector<8x8x8xf32>
    %10 = arith.maximumf %7, %9 : vector<8x8x8xf32>
    %11 = vector.shape_cast %10 : vector<8x8x8xf32> to vector<8x64xf32>
    %c0_1 = arith.constant 0 : index
    %c0_2 = arith.constant 0 : index
    %12 = vector.load %arg3[%c0_1, %c0_2] : memref<8x64xf32, #tpu.memory_space<vmem>>, vector<8x64xf32>
    tpu.vector_store %arg3[%c0_1, %c0_2], %11 {strides = array<i32>} : memref<8x64xf32, #tpu.memory_space<vmem>>, vector<8x64xf32>,
    return
  }
  func.func @transform_0(%arg0: i32, %arg1: i32) -> (i32, i32) {
    %c0_i32 = arith.constant 0 : i32
    return %arg0, %arg1 : i32, i32
  }
  func.func @transform_1(%arg0: i32, %arg1: i32) -> (i32, i32) {
    %c0_i32 = arith.constant 0 : i32
    return %arg0, %arg1 : i32, i32
  }
}

</mosaic_0001>

<llo_original>
// kernel: tpu_custom_call.1
$region0: #{tpu_custom_call.1}
  #allocation0 [shape = 'u32[]', space=smem, size = 0x4, offset = 0x4, fixed_abs, tag = 'smem constant byte address 0x4 - core index']
  #allocation1 [shape = 'u32[144,128]{1,0:T(1,128)}', space=vmem, size = 0x12000, scoped, tag = 'internal scratch']
  %s0 = inlined_call_operand.hbm [shape: f32[8,256], index: 0, kind: input, shape index: {}]
  %s1 = inlined_call_operand.hbm [shape: f32[8,64], index: 1, kind: output, shape index: {}]
  %s2 = sld [smem:[#allocation0]]
  $region18: #{tpu_custom_call.1} parent=0
    _
  %s4 = ssub.s32 1, %s2
  %s5 = scalar_select 0, %s4, %s2
  $region1: #{tpu_custom_call.1} parent=0
    #allocation2 [shape = 'u8[8192]{0}', space=vmem, size = 0x2000, scoped, tag = 'input window, operand 0, single buffered']
    #allocation3 [shape = 's32[1]{0}', space=sflag, size = 0x4, scoped, tag = 'scoped memory for tpu_custom_call.1']
    #allocation4 [shape = 's32[1]{0}', space=sflag, size = 0x4, scoped, tag = 'scoped memory for tpu_custom_call.1']
    #allocation5 [shape = 'u8[4096]{0}', space=vmem, size = 0x1000, scoped, tag = 'output window, operand 0, single buffered']
    %6 = vsyncpa [#allocation3], 0
    %7 = vsyncpa [#allocation4], 0
    // Predicated region
    $region2: #{tpu_custom_call.1} parent=1 // pred_check
      _
    $region3: #{tpu_custom_call.1} parent=1 // pred_check_branch
      %9 = sbr.rel (0) target = $region5
    $region4: #{tpu_custom_call.1} parent=1 // pred_region
      %s11 = ssub.s32 256, 256
      %12 = vsyncadd [#allocation3], %s11
      %s14 = sshll.u32 [#allocation2], 4
      %s15 = int_to_ptr.vmem [resolvable:$true] %s14
      %17 = dma.hbm_to_vmem [thread:$0]  %s0, 256, %s15, [#allocation3]
    $region5: #{tpu_custom_call.1} parent=1 // pred_fallthru
      _
    // Predicated region
    $region6: #{tpu_custom_call.1} parent=1 // pred_check
      _
    $region7: #{tpu_custom_call.1} parent=1 // pred_check_branch
      %19 = sbr.rel (0) target = $region9
    $region8: #{tpu_custom_call.1} parent=1 // pred_region
      %20 = dma.done [#allocation3], 256
    $region9: #{tpu_custom_call.1} parent=1 // pred_fallthru
      _
    %v21 = vld [vmem:[#allocation2] sm:$0xff]
    %v22 = vld [vmem:[#allocation2 + $0x8] sm:$0xff]
    %24 = vrot.lane.b32.xlu0 %v21, 96
    %v25 = vpop.permute.xlu0 %24
    %27 = vrot.lane.b32.xlu0 %v21, 64
    %v28 = vpop.permute.xlu0 %27
    %30 = vrot.lane.b32.xlu0 %v21, 32
    %v31 = vpop.permute.xlu0 %30
    %34 = vrot.lane.b32.xlu0 %v22, 96
    %v35 = vpop.permute.xlu0 %34
    %37 = vrot.lane.b32.xlu0 %v22, 64
    %v38 = vpop.permute.xlu0 %37
    %40 = vrot.lane.b32.xlu0 %v22, 32
    %v41 = vpop.permute.xlu0 %40
    %v43 = vcombine.low %v21, %v28
    %v44 = vcombine.high %v21, %v28
    %v46 = vunpack.c.l.s4 1983009808
    %v47 = vunpack.c.0.s8 %v46
    %v48 = vlaneseq
    %v49 = vshrl.u32 %v48, 7
    %v50 = vsub.s32 %v47, %v49
    %v51 = vrot.slane %v43, %v50
    %v53 = vunpack.c.l.s4 1983009808
    %v54 = vunpack.c.0.s8 %v53
    %v55 = vlaneseq
    %v56 = vshrl.u32 %v55, 7
    %v57 = vsub.s32 %v54, %v56
    %v58 = vrot.slane %v44, %v57
    %v59 = vcombine.low %v25, %v31
    %v60 = vcombine.high %v25, %v31
    %v62 = vunpack.c.l.s4 1983009808
    %v63 = vunpack.c.0.s8 %v62
    %v64 = vlaneseq
    %v65 = vshrl.u32 %v64, 7
    %v66 = vsub.s32 %v63, %v65
    %v67 = vrot.slane %v59, %v66
    %v69 = vunpack.c.l.s4 1983009808
    %v70 = vunpack.c.0.s8 %v69
    %v71 = vlaneseq
    %v72 = vshrl.u32 %v71, 7
    %v73 = vsub.s32 %v70, %v72
    %v74 = vrot.slane %v60, %v73
    %v75 = vcombine.low %v22, %v38
    %v76 = vcombine.high %v22, %v38
    %v78 = vunpack.c.l.s4 1983009808
    %v79 = vunpack.c.0.s8 %v78
    %v80 = vlaneseq
    %v81 = vshrl.u32 %v80, 7
    %v82 = vsub.s32 %v79, %v81
    %v83 = vrot.slane %v75, %v82
    %v85 = vunpack.c.l.s4 1983009808
    %v86 = vunpack.c.0.s8 %v85
    %v87 = vlaneseq
    %v88 = vshrl.u32 %v87, 7
    %v89 = vsub.s32 %v86, %v88
    %v90 = vrot.slane %v76, %v89
    %v91 = vcombine.low %v35, %v41
    %v92 = vcombine.high %v35, %v41
    %v94 = vunpack.c.l.s4 1983009808
    %v95 = vunpack.c.0.s8 %v94
    %v96 = vlaneseq
    %v97 = vshrl.u32 %v96, 7
    %v98 = vsub.s32 %v95, %v97
    %v99 = vrot.slane %v91, %v98
    %v101 = vunpack.c.l.s4 1983009808
    %v102 = vunpack.c.0.s8 %v101
    %v103 = vlaneseq
    %v104 = vshrl.u32 %v103, 7
    %v105 = vsub.s32 %v102, %v104
    %v106 = vrot.slane %v92, %v105
    %v107 = vcombine.low %v51, %v67
    %v108 = vcombine.high %v51, %v67
    %v110 = vunpack.c.l.s4 1934713408
    %v111 = vunpack.c.0.s8 %v110
    %v112 = vlaneseq
    %v113 = vshrl.u32 %v112, 7
    %v114 = vsub.s32 %v111, %v113
    %v115 = vrot.slane %v107, %v114
    %v117 = vunpack.c.l.s4 1934713408
    %v118 = vunpack.c.0.s8 %v117
    %v119 = vlaneseq
    %v120 = vshrl.u32 %v119, 7
    %v121 = vsub.s32 %v118, %v120
    %v122 = vrot.slane %v108, %v121
    %v123 = vcombine.low %v58, %v74
    %v124 = vcombine.high %v58, %v74
    %v126 = vunpack.c.l.s4 1934713408
    %v127 = vunpack.c.0.s8 %v126
    %v128 = vlaneseq
    %v129 = vshrl.u32 %v128, 7
    %v130 = vsub.s32 %v127, %v129
    %v131 = vrot.slane %v123, %v130
    %v133 = vunpack.c.l.s4 1934713408
    %v134 = vunpack.c.0.s8 %v133
    %v135 = vlaneseq
    %v136 = vshrl.u32 %v135, 7
    %v137 = vsub.s32 %v134, %v136
    %v138 = vrot.slane %v124, %v137
    %v139 = vcombine.low %v83, %v99
    %v140 = vcombine.high %v83, %v99
    %v142 = vunpack.c.l.s4 1934713408
    %v143 = vunpack.c.0.s8 %v142
    %v144 = vlaneseq
    %v145 = vshrl.u32 %v144, 7
    %v146 = vsub.s32 %v143, %v145
    %v147 = vrot.slane %v139, %v146
    %v149 = vunpack.c.l.s4 1934713408
    %v150 = vunpack.c.0.s8 %v149
    %v151 = vlaneseq
    %v152 = vshrl.u32 %v151, 7
    %v153 = vsub.s32 %v150, %v152
    %v154 = vrot.slane %v140, %v153
    %v155 = vcombine.low %v90, %v106
    %v156 = vcombine.high %v90, %v106
    %v158 = vunpack.c.l.s4 1934713408
    %v159 = vunpack.c.0.s8 %v158
    %v160 = vlaneseq
    %v161 = vshrl.u32 %v160, 7
    %v162 = vsub.s32 %v159, %v161
    %v163 = vrot.slane %v155, %v162
    %v165 = vunpack.c.l.s4 1934713408
    %v166 = vunpack.c.0.s8 %v165
    %v167 = vlaneseq
    %v168 = vshrl.u32 %v167, 7
    %v169 = vsub.s32 %v166, %v168
    %v170 = vrot.slane %v156, %v169
    %v171 = vcombine.low %v115, %v147
    %v172 = vcombine.high %v115, %v147
    %v173 = vcombine.low %v122, %v154
    %v174 = vcombine.high %v122, %v154
    %v175 = vcombine.low %v131, %v163
    %v176 = vcombine.high %v131, %v163
    %v177 = vcombine.low %v138, %v170
    %v178 = vcombine.high %v138, %v170
    %187 = vrot.lane.b32.xlu0 %v171, 112
    %v188 = vpop.permute.xlu0 %187
    %189 = vrot.lane.b32.xlu0 %v172, 112
    %v190 = vpop.permute.xlu0 %189
    %191 = vrot.lane.b32.xlu0 %v173, 112
    %v192 = vpop.permute.xlu0 %191
    %193 = vrot.lane.b32.xlu0 %v174, 112
    %v194 = vpop.permute.xlu0 %193
    %195 = vrot.lane.b32.xlu0 %v175, 112
    %v196 = vpop.permute.xlu0 %195
    %197 = vrot.lane.b32.xlu0 %v176, 112
    %v198 = vpop.permute.xlu0 %197
    %199 = vrot.lane.b32.xlu0 %v177, 112
    %v200 = vpop.permute.xlu0 %199
    %201 = vrot.lane.b32.xlu0 %v178, 112
    %v202 = vpop.permute.xlu0 %201
    %v211 = vmax.f32 %v171, %v188
    %v212 = vmax.f32 %v172, %v190
    %v213 = vmax.f32 %v173, %v192
    %v214 = vmax.f32 %v174, %v194
    %v215 = vmax.f32 %v175, %v196
    %v216 = vmax.f32 %v176, %v198
    %v217 = vmax.f32 %v177, %v200
    %v218 = vmax.f32 %v178, %v202
    %227 = vrot.lane.b32.xlu0 %v211, 126
    %v228 = vpop.permute.xlu0 %227
    %229 = vrot.lane.b32.xlu0 %v212, 126
    %v230 = vpop.permute.xlu0 %229
    %231 = vrot.lane.b32.xlu0 %v213, 126
    %v232 = vpop.permute.xlu0 %231
    %233 = vrot.lane.b32.xlu0 %v214, 126
    %v234 = vpop.permute.xlu0 %233
    %235 = vrot.lane.b32.xlu0 %v215, 126
    %v236 = vpop.permute.xlu0 %235
    %237 = vrot.lane.b32.xlu0 %v216, 126
    %v238 = vpop.permute.xlu0 %237
    %239 = vrot.lane.b32.xlu0 %v217, 126
    %v240 = vpop.permute.xlu0 %239
    %241 = vrot.lane.b32.xlu0 %v218, 126
    %v242 = vpop.permute.xlu0 %241
    %251 = vrot.lane.b32.xlu0 %v211, 124
    %v252 = vpop.permute.xlu0 %251
    %253 = vrot.lane.b32.xlu0 %v212, 124
    %v254 = vpop.permute.xlu0 %253
    %255 = vrot.lane.b32.xlu0 %v213, 124
    %v256 = vpop.permute.xlu0 %255
    %257 = vrot.lane.b32.xlu0 %v214, 124
    %v258 = vpop.permute.xlu0 %257
    %259 = vrot.lane.b32.xlu0 %v215, 124
    %v260 = vpop.permute.xlu0 %259
    %261 = vrot.lane.b32.xlu0 %v216, 124
    %v262 = vpop.permute.xlu0 %261
    %263 = vrot.lane.b32.xlu0 %v217, 124
    %v264 = vpop.permute.xlu0 %263
    %265 = vrot.lane.b32.xlu0 %v218, 124
    %v266 = vpop.permute.xlu0 %265
    %275 = vrot.lane.b32.xlu0 %v211, 122
    %v276 = vpop.permute.xlu0 %275
    %277 = vrot.lane.b32.xlu0 %v212, 122
    %v278 = vpop.permute.xlu0 %277
    %279 = vrot.lane.b32.xlu0 %v213, 122
    %v280 = vpop.permute.xlu0 %279
    %281 = vrot.lane.b32.xlu0 %v214, 122
    %v282 = vpop.permute.xlu0 %281
    %283 = vrot.lane.b32.xlu0 %v215, 122
    %v284 = vpop.permute.xlu0 %283
    %285 = vrot.lane.b32.xlu0 %v216, 122
    %v286 = vpop.permute.xlu0 %285
    %287 = vrot.lane.b32.xlu0 %v217, 122
    %v288 = vpop.permute.xlu0 %287
    %289 = vrot.lane.b32.xlu0 %v218, 122
    %v290 = vpop.permute.xlu0 %289
    %299 = vrot.lane.b32.xlu0 %v211, 120
    %v300 = vpop.permute.xlu0 %299
    %301 = vrot.lane.b32.xlu0 %v212, 120
    %v302 = vpop.permute.xlu0 %301
    %303 = vrot.lane.b32.xlu0 %v213, 120
    %v304 = vpop.permute.xlu0 %303
    %305 = vrot.lane.b32.xlu0 %v214, 120
    %v306 = vpop.permute.xlu0 %305
    %307 = vrot.lane.b32.xlu0 %v215, 120
    %v308 = vpop.permute.xlu0 %307
    %309 = vrot.lane.b32.xlu0 %v216, 120
    %v310 = vpop.permute.xlu0 %309
    %311 = vrot.lane.b32.xlu0 %v217, 120
    %v312 = vpop.permute.xlu0 %311
    %313 = vrot.lane.b32.xlu0 %v218, 120
    %v314 = vpop.permute.xlu0 %313
    %323 = vrot.lane.b32.xlu0 %v211, 118
    %v324 = vpop.permute.xlu0 %323
    %325 = vrot.lane.b32.xlu0 %v212, 118
    %v326 = vpop.permute.xlu0 %325
    %327 = vrot.lane.b32.xlu0 %v213, 118
    %v328 = vpop.permute.xlu0 %327
    %329 = vrot.lane.b32.xlu0 %v214, 118
    %v330 = vpop.permute.xlu0 %329
    %331 = vrot.lane.b32.xlu0 %v215, 118
    %v332 = vpop.permute.xlu0 %331
    %333 = vrot.lane.b32.xlu0 %v216, 118
    %v334 = vpop.permute.xlu0 %333
    %335 = vrot.lane.b32.xlu0 %v217, 118
    %v336 = vpop.permute.xlu0 %335
    %337 = vrot.lane.b32.xlu0 %v218, 118
    %v338 = vpop.permute.xlu0 %337
    %347 = vrot.lane.b32.xlu0 %v211, 116
    %v348 = vpop.permute.xlu0 %347
    %349 = vrot.lane.b32.xlu0 %v212, 116
    %v350 = vpop.permute.xlu0 %349
    %351 = vrot.lane.b32.xlu0 %v213, 116
    %v352 = vpop.permute.xlu0 %351
    %353 = vrot.lane.b32.xlu0 %v214, 116
    %v354 = vpop.permute.xlu0 %353
    %355 = vrot.lane.b32.xlu0 %v215, 116
    %v356 = vpop.permute.xlu0 %355
    %357 = vrot.lane.b32.xlu0 %v216, 116
    %v358 = vpop.permute.xlu0 %357
    %359 = vrot.lane.b32.xlu0 %v217, 116
    %v360 = vpop.permute.xlu0 %359
    %361 = vrot.lane.b32.xlu0 %v218, 116
    %v362 = vpop.permute.xlu0 %361
    %371 = vrot.lane.b32.xlu0 %v211, 114
    %v372 = vpop.permute.xlu0 %371
    %373 = vrot.lane.b32.xlu0 %v212, 114
    %v374 = vpop.permute.xlu0 %373
    %375 = vrot.lane.b32.xlu0 %v213, 114
    %v376 = vpop.permute.xlu0 %375
    %377 = vrot.lane.b32.xlu0 %v214, 114
    %v378 = vpop.permute.xlu0 %377
    %379 = vrot.lane.b32.xlu0 %v215, 114
    %v380 = vpop.permute.xlu0 %379
    %381 = vrot.lane.b32.xlu0 %v216, 114
    %v382 = vpop.permute.xlu0 %381
    %383 = vrot.lane.b32.xlu0 %v217, 114
    %v384 = vpop.permute.xlu0 %383
    %385 = vrot.lane.b32.xlu0 %v218, 114
    %v386 = vpop.permute.xlu0 %385
    %v395 = vcombine.low %v211, %v252
    %v396 = vcombine.high %v211, %v252
    %v398 = vunpack.c.l.s4 1983009808
    %v399 = vunpack.c.0.s8 %v398
    %v400 = vlaneseq
    %v401 = vshrl.u32 %v400, 7
    %v402 = vsub.s32 %v399, %v401
    %v403 = vrot.slane %v395, %v402
    %v405 = vunpack.c.l.s4 1983009808
    %v406 = vunpack.c.0.s8 %v405
    %v407 = vlaneseq
    %v408 = vshrl.u32 %v407, 7
    %v409 = vsub.s32 %v406, %v408
    %v410 = vrot.slane %v396, %v409
    %v411 = vcombine.low %v228, %v276
    %v412 = vcombine.high %v228, %v276
    %v414 = vunpack.c.l.s4 1983009808
    %v415 = vunpack.c.0.s8 %v414
    %v416 = vlaneseq
    %v417 = vshrl.u32 %v416, 7
    %v418 = vsub.s32 %v415, %v417
    %v419 = vrot.slane %v411, %v418
    %v421 = vunpack.c.l.s4 1983009808
    %v422 = vunpack.c.0.s8 %v421
    %v423 = vlaneseq
    %v424 = vshrl.u32 %v423, 7
    %v425 = vsub.s32 %v422, %v424
    %v426 = vrot.slane %v412, %v425
    %v427 = vcombine.low %v300, %v348
    %v428 = vcombine.high %v300, %v348
    %v430 = vunpack.c.l.s4 1983009808
    %v431 = vunpack.c.0.s8 %v430
    %v432 = vlaneseq
    %v433 = vshrl.u32 %v432, 7
    %v434 = vsub.s32 %v431, %v433
    %v435 = vrot.slane %v427, %v434
    %v437 = vunpack.c.l.s4 1983009808
    %v438 = vunpack.c.0.s8 %v437
    %v439 = vlaneseq
    %v440 = vshrl.u32 %v439, 7
    %v441 = vsub.s32 %v438, %v440
    %v442 = vrot.slane %v428, %v441
    %v443 = vcombine.low %v324, %v372
    %v444 = vcombine.high %v324, %v372
    %v446 = vunpack.c.l.s4 1983009808
    %v447 = vunpack.c.0.s8 %v446
    %v448 = vlaneseq
    %v449 = vshrl.u32 %v448, 7
    %v450 = vsub.s32 %v447, %v449
    %v451 = vrot.slane %v443, %v450
    %v453 = vunpack.c.l.s4 1983009808
    %v454 = vunpack.c.0.s8 %v453
    %v455 = vlaneseq
    %v456 = vshrl.u32 %v455, 7
    %v457 = vsub.s32 %v454, %v456
    %v458 = vrot.slane %v444, %v457
    %v459 = vcombine.low %v403, %v419
    %v460 = vcombine.high %v403, %v419
    %v462 = vunpack.c.l.s4 1934713408
    %v463 = vunpack.c.0.s8 %v462
    %v464 = vlaneseq
    %v465 = vshrl.u32 %v464, 7
    %v466 = vsub.s32 %v463, %v465
    %v467 = vrot.slane %v459, %v466
    %v469 = vunpack.c.l.s4 1934713408
    %v470 = vunpack.c.0.s8 %v469
    %v471 = vlaneseq
    %v472 = vshrl.u32 %v471, 7
    %v473 = vsub.s32 %v470, %v472
    %v474 = vrot.slane %v460, %v473
    %v475 = vcombine.low %v410, %v426
    %v476 = vcombine.high %v410, %v426
    %v478 = vunpack.c.l.s4 1934713408
    %v479 = vunpack.c.0.s8 %v478
    %v480 = vlaneseq
    %v481 = vshrl.u32 %v480, 7
    %v482 = vsub.s32 %v479, %v481
    %v483 = vrot.slane %v475, %v482
    %v485 = vunpack.c.l.s4 1934713408
    %v486 = vunpack.c.0.s8 %v485
    %v487 = vlaneseq
    %v488 = vshrl.u32 %v487, 7
    %v489 = vsub.s32 %v486, %v488
    %v490 = vrot.slane %v476, %v489
    %v491 = vcombine.low %v435, %v451
    %v492 = vcombine.high %v435, %v451
    %v494 = vunpack.c.l.s4 1934713408
    %v495 = vunpack.c.0.s8 %v494
    %v496 = vlaneseq
    %v497 = vshrl.u32 %v496, 7
    %v498 = vsub.s32 %v495, %v497
    %v499 = vrot.slane %v491, %v498
    %v501 = vunpack.c.l.s4 1934713408
    %v502 = vunpack.c.0.s8 %v501
    %v503 = vlaneseq
    %v504 = vshrl.u32 %v503, 7
    %v505 = vsub.s32 %v502, %v504
    %v506 = vrot.slane %v492, %v505
    %v507 = vcombine.low %v442, %v458
    %v508 = vcombine.high %v442, %v458
    %v510 = vunpack.c.l.s4 1934713408
    %v511 = vunpack.c.0.s8 %v510
    %v512 = vlaneseq
    %v513 = vshrl.u32 %v512, 7
    %v514 = vsub.s32 %v511, %v513
    %v515 = vrot.slane %v507, %v514
    %v517 = vunpack.c.l.s4 1934713408
    %v518 = vunpack.c.0.s8 %v517
    %v519 = vlaneseq
    %v520 = vshrl.u32 %v519, 7
    %v521 = vsub.s32 %v518, %v520
    %v522 = vrot.slane %v508, %v521
    %v523 = vcombine.low %v467, %v499
    %v524 = vcombine.high %v467, %v499
    %v525 = vcombine.low %v474, %v506
    %v526 = vcombine.high %v474, %v506
    %v527 = vcombine.low %v483, %v515
    %v528 = vcombine.high %v483, %v515
    %v529 = vcombine.low %v490, %v522
    %v530 = vcombine.high %v490, %v522
    %v531 = vcombine.low %v212, %v254
    %v532 = vcombine.high %v212, %v254
    %v534 = vunpack.c.l.s4 1983009808
    %v535 = vunpack.c.0.s8 %v534
    %v536 = vlaneseq
    %v537 = vshrl.u32 %v536, 7
    %v538 = vsub.s32 %v535, %v537
    %v539 = vrot.slane %v531, %v538
    %v541 = vunpack.c.l.s4 1983009808
    %v542 = vunpack.c.0.s8 %v541
    %v543 = vlaneseq
    %v544 = vshrl.u32 %v543, 7
    %v545 = vsub.s32 %v542, %v544
    %v546 = vrot.slane %v532, %v545
    %v547 = vcombine.low %v230, %v278
    %v548 = vcombine.high %v230, %v278
    %v550 = vunpack.c.l.s4 1983009808
    %v551 = vunpack.c.0.s8 %v550
    %v552 = vlaneseq
    %v553 = vshrl.u32 %v552, 7
    %v554 = vsub.s32 %v551, %v553
    %v555 = vrot.slane %v547, %v554
    %v557 = vunpack.c.l.s4 1983009808
    %v558 = vunpack.c.0.s8 %v557
    %v559 = vlaneseq
    %v560 = vshrl.u32 %v559, 7
    %v561 = vsub.s32 %v558, %v560
    %v562 = vrot.slane %v548, %v561
    %v563 = vcombine.low %v302, %v350
    %v564 = vcombine.high %v302, %v350
    %v566 = vunpack.c.l.s4 1983009808
    %v567 = vunpack.c.0.s8 %v566
    %v568 = vlaneseq
    %v569 = vshrl.u32 %v568, 7
    %v570 = vsub.s32 %v567, %v569
    %v571 = vrot.slane %v563, %v570
    %v573 = vunpack.c.l.s4 1983009808
    %v574 = vunpack.c.0.s8 %v573
    %v575 = vlaneseq
    %v576 = vshrl.u32 %v575, 7
    %v577 = vsub.s32 %v574, %v576
    %v578 = vrot.slane %v564, %v577
    %v579 = vcombine.low %v326, %v374
    %v580 = vcombine.high %v326, %v374
    %v582 = vunpack.c.l.s4 1983009808
    %v583 = vunpack.c.0.s8 %v582
    %v584 = vlaneseq
    %v585 = vshrl.u32 %v584, 7
    %v586 = vsub.s32 %v583, %v585
    %v587 = vrot.slane %v579, %v586
    %v589 = vunpack.c.l.s4 1983009808
    %v590 = vunpack.c.0.s8 %v589
    %v591 = vlaneseq
    %v592 = vshrl.u32 %v591, 7
    %v593 = vsub.s32 %v590, %v592
    %v594 = vrot.slane %v580, %v593
    %v595 = vcombine.low %v539, %v555
    %v596 = vcombine.high %v539, %v555
    %v598 = vunpack.c.l.s4 1934713408
    %v599 = vunpack.c.0.s8 %v598
    %v600 = vlaneseq
    %v601 = vshrl.u32 %v600, 7
    %v602 = vsub.s32 %v599, %v601
    %v603 = vrot.slane %v595, %v602
    %v605 = vunpack.c.l.s4 1934713408
    %v606 = vunpack.c.0.s8 %v605
    %v607 = vlaneseq
    %v608 = vshrl.u32 %v607, 7
    %v609 = vsub.s32 %v606, %v608
    %v610 = vrot.slane %v596, %v609
    %v611 = vcombine.low %v546, %v562
    %v612 = vcombine.high %v546, %v562
    %v614 = vunpack.c.l.s4 1934713408
    %v615 = vunpack.c.0.s8 %v614
    %v616 = vlaneseq
    %v617 = vshrl.u32 %v616, 7
    %v618 = vsub.s32 %v615, %v617
    %v619 = vrot.slane %v611, %v618
    %v621 = vunpack.c.l.s4 1934713408
    %v622 = vunpack.c.0.s8 %v621
    %v623 = vlaneseq
    %v624 = vshrl.u32 %v623, 7
    %v625 = vsub.s32 %v622, %v624
    %v626 = vrot.slane %v612, %v625
    %v627 = vcombine.low %v571, %v587
    %v628 = vcombine.high %v571, %v587
    %v630 = vunpack.c.l.s4 1934713408
    %v631 = vunpack.c.0.s8 %v630
    %v632 = vlaneseq
    %v633 = vshrl.u32 %v632, 7
    %v634 = vsub.s32 %v631, %v633
    %v635 = vrot.slane %v627, %v634
    %v637 = vunpack.c.l.s4 1934713408
    %v638 = vunpack.c.0.s8 %v637
    %v639 = vlaneseq
    %v640 = vshrl.u32 %v639, 7
    %v641 = vsub.s32 %v638, %v640
    %v642 = vrot.slane %v628, %v641
    %v643 = vcombine.low %v578, %v594
    %v644 = vcombine.high %v578, %v594
    %v646 = vunpack.c.l.s4 1934713408
    %v647 = vunpack.c.0.s8 %v646
    %v648 = vlaneseq
    %v649 = vshrl.u32 %v648, 7
    %v650 = vsub.s32 %v647, %v649
    %v651 = vrot.slane %v643, %v650
    %v653 = vunpack.c.l.s4 1934713408
    %v654 = vunpack.c.0.s8 %v653
    %v655 = vlaneseq
    %v656 = vshrl.u32 %v655, 7
    %v657 = vsub.s32 %v654, %v656
    %v658 = vrot.slane %v644, %v657
    %v659 = vcombine.low %v603, %v635
    %v660 = vcombine.high %v603, %v635
    %v661 = vcombine.low %v610, %v642
    %v662 = vcombine.high %v610, %v642
    %v663 = vcombine.low %v619, %v651
    %v664 = vcombine.high %v619, %v651
    %v665 = vcombine.low %v626, %v658
    %v666 = vcombine.high %v626, %v658
    %v667 = vcombine.low %v213, %v256
    %v668 = vcombine.high %v213, %v256
    %v670 = vunpack.c.l.s4 1983009808
    %v671 = vunpack.c.0.s8 %v670
    %v672 = vlaneseq
    %v673 = vshrl.u32 %v672, 7
    %v674 = vsub.s32 %v671, %v673
    %v675 = vrot.slane %v667, %v674
    %v677 = vunpack.c.l.s4 1983009808
    %v678 = vunpack.c.0.s8 %v677
    %v679 = vlaneseq
    %v680 = vshrl.u32 %v679, 7
    %v681 = vsub.s32 %v678, %v680
    %v682 = vrot.slane %v668, %v681
    %v683 = vcombine.low %v232, %v280
    %v684 = vcombine.high %v232, %v280
    %v686 = vunpack.c.l.s4 1983009808
    %v687 = vunpack.c.0.s8 %v686
    %v688 = vlaneseq
    %v689 = vshrl.u32 %v688, 7
    %v690 = vsub.s32 %v687, %v689
    %v691 = vrot.slane %v683, %v690
    %v693 = vunpack.c.l.s4 1983009808
    %v694 = vunpack.c.0.s8 %v693
    %v695 = vlaneseq
    %v696 = vshrl.u32 %v695, 7
    %v697 = vsub.s32 %v694, %v696
    %v698 = vrot.slane %v684, %v697
    %v699 = vcombine.low %v304, %v352
    %v700 = vcombine.high %v304, %v352
    %v702 = vunpack.c.l.s4 1983009808
    %v703 = vunpack.c.0.s8 %v702
    %v704 = vlaneseq
    %v705 = vshrl.u32 %v704, 7
    %v706 = vsub.s32 %v703, %v705
    %v707 = vrot.slane %v699, %v706
    %v709 = vunpack.c.l.s4 1983009808
    %v710 = vunpack.c.0.s8 %v709
    %v711 = vlaneseq
    %v712 = vshrl.u32 %v711, 7
    %v713 = vsub.s32 %v710, %v712
    %v714 = vrot.slane %v700, %v713
    %v715 = vcombine.low %v328, %v376
    %v716 = vcombine.high %v328, %v376
    %v718 = vunpack.c.l.s4 1983009808
    %v719 = vunpack.c.0.s8 %v718
    %v720 = vlaneseq
    %v721 = vshrl.u32 %v720, 7
    %v722 = vsub.s32 %v719, %v721
    %v723 = vrot.slane %v715, %v722
    %v725 = vunpack.c.l.s4 1983009808
    %v726 = vunpack.c.0.s8 %v725
    %v727 = vlaneseq
    %v728 = vshrl.u32 %v727, 7
    %v729 = vsub.s32 %v726, %v728
    %v730 = vrot.slane %v716, %v729
    %v731 = vcombine.low %v675, %v691
    %v732 = vcombine.high %v675, %v691
    %v734 = vunpack.c.l.s4 1934713408
    %v735 = vunpack.c.0.s8 %v734
    %v736 = vlaneseq
    %v737 = vshrl.u32 %v736, 7
    %v738 = vsub.s32 %v735, %v737
    %v739 = vrot.slane %v731, %v738
    %v741 = vunpack.c.l.s4 1934713408
    %v742 = vunpack.c.0.s8 %v741
    %v743 = vlaneseq
    %v744 = vshrl.u32 %v743, 7
    %v745 = vsub.s32 %v742, %v744
    %v746 = vrot.slane %v732, %v745
    %v747 = vcombine.low %v682, %v698
    %v748 = vcombine.high %v682, %v698
    %v750 = vunpack.c.l.s4 1934713408
    %v751 = vunpack.c.0.s8 %v750
    %v752 = vlaneseq
    %v753 = vshrl.u32 %v752, 7
    %v754 = vsub.s32 %v751, %v753
    %v755 = vrot.slane %v747, %v754
    %v757 = vunpack.c.l.s4 1934713408
    %v758 = vunpack.c.0.s8 %v757
    %v759 = vlaneseq
    %v760 = vshrl.u32 %v759, 7
    %v761 = vsub.s32 %v758, %v760
    %v762 = vrot.slane %v748, %v761
    %v763 = vcombine.low %v707, %v723
    %v764 = vcombine.high %v707, %v723
    %v766 = vunpack.c.l.s4 1934713408
    %v767 = vunpack.c.0.s8 %v766
    %v768 = vlaneseq
    %v769 = vshrl.u32 %v768, 7
    %v770 = vsub.s32 %v767, %v769
    %v771 = vrot.slane %v763, %v770
    %v773 = vunpack.c.l.s4 1934713408
    %v774 = vunpack.c.0.s8 %v773
    %v775 = vlaneseq
    %v776 = vshrl.u32 %v775, 7
    %v777 = vsub.s32 %v774, %v776
    %v778 = vrot.slane %v764, %v777
    %v779 = vcombine.low %v714, %v730
    %v780 = vcombine.high %v714, %v730
    %v782 = vunpack.c.l.s4 1934713408
    %v783 = vunpack.c.0.s8 %v782
    %v784 = vlaneseq
    %v785 = vshrl.u32 %v784, 7
    %v786 = vsub.s32 %v783, %v785
    %v787 = vrot.slane %v779, %v786
    %v789 = vunpack.c.l.s4 1934713408
    %v790 = vunpack.c.0.s8 %v789
    %v791 = vlaneseq
    %v792 = vshrl.u32 %v791, 7
    %v793 = vsub.s32 %v790, %v792
    %v794 = vrot.slane %v780, %v793
    %v795 = vcombine.low %v739, %v771
    %v796 = vcombine.high %v739, %v771
    %v797 = vcombine.low %v746, %v778
    %v798 = vcombine.high %v746, %v778
    %v799 = vcombine.low %v755, %v787
    %v800 = vcombine.high %v755, %v787
    %v801 = vcombine.low %v762, %v794
    %v802 = vcombine.high %v762, %v794
    %v803 = vcombine.low %v214, %v258
    %v804 = vcombine.high %v214, %v258
    %v806 = vunpack.c.l.s4 1983009808
    %v807 = vunpack.c.0.s8 %v806
    %v808 = vlaneseq
    %v809 = vshrl.u32 %v808, 7
    %v810 = vsub.s32 %v807, %v809
    %v811 = vrot.slane %v803, %v810
    %v813 = vunpack.c.l.s4 1983009808
    %v814 = vunpack.c.0.s8 %v813
    %v815 = vlaneseq
    %v816 = vshrl.u32 %v815, 7
    %v817 = vsub.s32 %v814, %v816
    %v818 = vrot.slane %v804, %v817
    %v819 = vcombine.low %v234, %v282
    %v820 = vcombine.high %v234, %v282
    %v822 = vunpack.c.l.s4 1983009808
    %v823 = vunpack.c.0.s8 %v822
    %v824 = vlaneseq
    %v825 = vshrl.u32 %v824, 7
    %v826 = vsub.s32 %v823, %v825
    %v827 = vrot.slane %v819, %v826
    %v829 = vunpack.c.l.s4 1983009808
    %v830 = vunpack.c.0.s8 %v829
    %v831 = vlaneseq
    %v832 = vshrl.u32 %v831, 7
    %v833 = vsub.s32 %v830, %v832
    %v834 = vrot.slane %v820, %v833
    %v835 = vcombine.low %v306, %v354
    %v836 = vcombine.high %v306, %v354
    %v838 = vunpack.c.l.s4 1983009808
    %v839 = vunpack.c.0.s8 %v838
    %v840 = vlaneseq
    %v841 = vshrl.u32 %v840, 7
    %v842 = vsub.s32 %v839, %v841
    %v843 = vrot.slane %v835, %v842
    %v845 = vunpack.c.l.s4 1983009808
    %v846 = vunpack.c.0.s8 %v845
    %v847 = vlaneseq
    %v848 = vshrl.u32 %v847, 7
    %v849 = vsub.s32 %v846, %v848
    %v850 = vrot.slane %v836, %v849
    %v851 = vcombine.low %v330, %v378
    %v852 = vcombine.high %v330, %v378
    %v854 = vunpack.c.l.s4 1983009808
    %v855 = vunpack.c.0.s8 %v854
    %v856 = vlaneseq
    %v857 = vshrl.u32 %v856, 7
    %v858 = vsub.s32 %v855, %v857
    %v859 = vrot.slane %v851, %v858
    %v861 = vunpack.c.l.s4 1983009808
    %v862 = vunpack.c.0.s8 %v861
    %v863 = vlaneseq
    %v864 = vshrl.u32 %v863, 7
    %v865 = vsub.s32 %v862, %v864
    %v866 = vrot.slane %v852, %v865
    %v867 = vcombine.low %v811, %v827
    %v868 = vcombine.high %v811, %v827
    %v870 = vunpack.c.l.s4 1934713408
    %v871 = vunpack.c.0.s8 %v870
    %v872 = vlaneseq
    %v873 = vshrl.u32 %v872, 7
    %v874 = vsub.s32 %v871, %v873
    %v875 = vrot.slane %v867, %v874
    %v877 = vunpack.c.l.s4 1934713408
    %v878 = vunpack.c.0.s8 %v877
    %v879 = vlaneseq
    %v880 = vshrl.u32 %v879, 7
    %v881 = vsub.s32 %v878, %v880
    %v882 = vrot.slane %v868, %v881
    %v883 = vcombine.low %v818, %v834
    %v884 = vcombine.high %v818, %v834
    %v886 = vunpack.c.l.s4 1934713408
    %v887 = vunpack.c.0.s8 %v886
    %v888 = vlaneseq
    %v889 = vshrl.u32 %v888, 7
    %v890 = vsub.s32 %v887, %v889
    %v891 = vrot.slane %v883, %v890
    %v893 = vunpack.c.l.s4 1934713408
    %v894 = vunpack.c.0.s8 %v893
    %v895 = vlaneseq
    %v896 = vshrl.u32 %v895, 7
    %v897 = vsub.s32 %v894, %v896
    %v898 = vrot.slane %v884, %v897
    %v899 = vcombine.low %v843, %v859
    %v900 = vcombine.high %v843, %v859
    %v902 = vunpack.c.l.s4 1934713408
    %v903 = vunpack.c.0.s8 %v902
    %v904 = vlaneseq
    %v905 = vshrl.u32 %v904, 7
    %v906 = vsub.s32 %v903, %v905
    %v907 = vrot.slane %v899, %v906
    %v909 = vunpack.c.l.s4 1934713408
    %v910 = vunpack.c.0.s8 %v909
    %v911 = vlaneseq
    %v912 = vshrl.u32 %v911, 7
    %v913 = vsub.s32 %v910, %v912
    %v914 = vrot.slane %v900, %v913
    %v915 = vcombine.low %v850, %v866
    %v916 = vcombine.high %v850, %v866
    %v918 = vunpack.c.l.s4 1934713408
    %v919 = vunpack.c.0.s8 %v918
    %v920 = vlaneseq
    %v921 = vshrl.u32 %v920, 7
    %v922 = vsub.s32 %v919, %v921
    %v923 = vrot.slane %v915, %v922
    %v925 = vunpack.c.l.s4 1934713408
    %v926 = vunpack.c.0.s8 %v925
    %v927 = vlaneseq
    %v928 = vshrl.u32 %v927, 7
    %v929 = vsub.s32 %v926, %v928
    %v930 = vrot.slane %v916, %v929
    %v931 = vcombine.low %v875, %v907
    %v932 = vcombine.high %v875, %v907
    %v933 = vcombine.low %v882, %v914
    %v934 = vcombine.high %v882, %v914
    %v935 = vcombine.low %v891, %v923
    %v936 = vcombine.high %v891, %v923
    %v937 = vcombine.low %v898, %v930
    %v938 = vcombine.high %v898, %v930
    %v939 = vcombine.low %v215, %v260
    %v940 = vcombine.high %v215, %v260
    %v942 = vunpack.c.l.s4 1983009808
    %v943 = vunpack.c.0.s8 %v942
    %v944 = vlaneseq
    %v945 = vshrl.u32 %v944, 7
    %v946 = vsub.s32 %v943, %v945
    %v947 = vrot.slane %v939, %v946
    %v949 = vunpack.c.l.s4 1983009808
    %v950 = vunpack.c.0.s8 %v949
    %v951 = vlaneseq
    %v952 = vshrl.u32 %v951, 7
    %v953 = vsub.s32 %v950, %v952
    %v954 = vrot.slane %v940, %v953
    %v955 = vcombine.low %v236, %v284
    %v956 = vcombine.high %v236, %v284
    %v958 = vunpack.c.l.s4 1983009808
    %v959 = vunpack.c.0.s8 %v958
    %v960 = vlaneseq
    %v961 = vshrl.u32 %v960, 7
    %v962 = vsub.s32 %v959, %v961
    %v963 = vrot.slane %v955, %v962
    %v965 = vunpack.c.l.s4 1983009808
    %v966 = vunpack.c.0.s8 %v965
    %v967 = vlaneseq
    %v968 = vshrl.u32 %v967, 7
    %v969 = vsub.s32 %v966, %v968
    %v970 = vrot.slane %v956, %v969
    %v971 = vcombine.low %v308, %v356
    %v972 = vcombine.high %v308, %v356
    %v974 = vunpack.c.l.s4 1983009808
    %v975 = vunpack.c.0.s8 %v974
    %v976 = vlaneseq
    %v977 = vshrl.u32 %v976, 7
    %v978 = vsub.s32 %v975, %v977
    %v979 = vrot.slane %v971, %v978
    %v981 = vunpack.c.l.s4 1983009808
    %v982 = vunpack.c.0.s8 %v981
    %v983 = vlaneseq
    %v984 = vshrl.u32 %v983, 7
    %v985 = vsub.s32 %v982, %v984
    %v986 = vrot.slane %v972, %v985
    %v987 = vcombine.low %v332, %v380
    %v988 = vcombine.high %v332, %v380
    %v990 = vunpack.c.l.s4 1983009808
    %v991 = vunpack.c.0.s8 %v990
    %v992 = vlaneseq
    %v993 = vshrl.u32 %v992, 7
    %v994 = vsub.s32 %v991, %v993
    %v995 = vrot.slane %v987, %v994
    %v997 = vunpack.c.l.s4 1983009808
    %v998 = vunpack.c.0.s8 %v997
    %v999 = vlaneseq
    %v1000 = vshrl.u32 %v999, 7
    %v1001 = vsub.s32 %v998, %v1000
    %v1002 = vrot.slane %v988, %v1001
    %v1003 = vcombine.low %v947, %v963
    %v1004 = vcombine.high %v947, %v963
    %v1006 = vunpack.c.l.s4 1934713408
    %v1007 = vunpack.c.0.s8 %v1006
    %v1008 = vlaneseq
    %v1009 = vshrl.u32 %v1008, 7
    %v1010 = vsub.s32 %v1007, %v1009
    %v1011 = vrot.slane %v1003, %v1010
    %v1013 = vunpack.c.l.s4 1934713408
    %v1014 = vunpack.c.0.s8 %v1013
    %v1015 = vlaneseq
    %v1016 = vshrl.u32 %v1015, 7
    %v1017 = vsub.s32 %v1014, %v1016
    %v1018 = vrot.slane %v1004, %v1017
    %v1019 = vcombine.low %v954, %v970
    %v1020 = vcombine.high %v954, %v970
    %v1022 = vunpack.c.l.s4 1934713408
    %v1023 = vunpack.c.0.s8 %v1022
    %v1024 = vlaneseq
    %v1025 = vshrl.u32 %v1024, 7
    %v1026 = vsub.s32 %v1023, %v1025
    %v1027 = vrot.slane %v1019, %v1026
    %v1029 = vunpack.c.l.s4 1934713408
    %v1030 = vunpack.c.0.s8 %v1029
    %v1031 = vlaneseq
    %v1032 = vshrl.u32 %v1031, 7
    %v1033 = vsub.s32 %v1030, %v1032
    %v1034 = vrot.slane %v1020, %v1033
    %v1035 = vcombine.low %v979, %v995
    %v1036 = vcombine.high %v979, %v995
    %v1038 = vunpack.c.l.s4 1934713408
    %v1039 = vunpack.c.0.s8 %v1038
    %v1040 = vlaneseq
    %v1041 = vshrl.u32 %v1040, 7
    %v1042 = vsub.s32 %v1039, %v1041
    %v1043 = vrot.slane %v1035, %v1042
    %v1045 = vunpack.c.l.s4 1934713408
    %v1046 = vunpack.c.0.s8 %v1045
    %v1047 = vlaneseq
    %v1048 = vshrl.u32 %v1047, 7
    %v1049 = vsub.s32 %v1046, %v1048
    %v1050 = vrot.slane %v1036, %v1049
    %v1051 = vcombine.low %v986, %v1002
    %v1052 = vcombine.high %v986, %v1002
    %v1054 = vunpack.c.l.s4 1934713408
    %v1055 = vunpack.c.0.s8 %v1054
    %v1056 = vlaneseq
    %v1057 = vshrl.u32 %v1056, 7
    %v1058 = vsub.s32 %v1055, %v1057
    %v1059 = vrot.slane %v1051, %v1058
    %v1061 = vunpack.c.l.s4 1934713408
    %v1062 = vunpack.c.0.s8 %v1061
    %v1063 = vlaneseq
    %v1064 = vshrl.u32 %v1063, 7
    %v1065 = vsub.s32 %v1062, %v1064
    %v1066 = vrot.slane %v1052, %v1065
    %v1067 = vcombine.low %v1011, %v1043
    %v1068 = vcombine.high %v1011, %v1043
    %v1069 = vcombine.low %v1018, %v1050
    %v1070 = vcombine.high %v1018, %v1050
    %v1071 = vcombine.low %v1027, %v1059
    %v1072 = vcombine.high %v1027, %v1059
    %v1073 = vcombine.low %v1034, %v1066
    %v1074 = vcombine.high %v1034, %v1066
    %v1075 = vcombine.low %v216, %v262
    %v1076 = vcombine.high %v216, %v262
    %v1078 = vunpack.c.l.s4 1983009808
    %v1079 = vunpack.c.0.s8 %v1078
    %v1080 = vlaneseq
    %v1081 = vshrl.u32 %v1080, 7
    %v1082 = vsub.s32 %v1079, %v1081
    %v1083 = vrot.slane %v1075, %v1082
    %v1085 = vunpack.c.l.s4 1983009808
    %v1086 = vunpack.c.0.s8 %v1085
    %v1087 = vlaneseq
    %v1088 = vshrl.u32 %v1087, 7
    %v1089 = vsub.s32 %v1086, %v1088
    %v1090 = vrot.slane %v1076, %v1089
    %v1091 = vcombine.low %v238, %v286
    %v1092 = vcombine.high %v238, %v286
    %v1094 = vunpack.c.l.s4 1983009808
    %v1095 = vunpack.c.0.s8 %v1094
    %v1096 = vlaneseq
    %v1097 = vshrl.u32 %v1096, 7
    %v1098 = vsub.s32 %v1095, %v1097
    %v1099 = vrot.slane %v1091, %v1098
    %v1101 = vunpack.c.l.s4 1983009808
    %v1102 = vunpack.c.0.s8 %v1101
    %v1103 = vlaneseq
    %v1104 = vshrl.u32 %v1103, 7
    %v1105 = vsub.s32 %v1102, %v1104
    %v1106 = vrot.slane %v1092, %v1105
    %v1107 = vcombine.low %v310, %v358
    %v1108 = vcombine.high %v310, %v358
    %v1110 = vunpack.c.l.s4 1983009808
    %v1111 = vunpack.c.0.s8 %v1110
    %v1112 = vlaneseq
    %v1113 = vshrl.u32 %v1112, 7
    %v1114 = vsub.s32 %v1111, %v1113
    %v1115 = vrot.slane %v1107, %v1114
    %v1117 = vunpack.c.l.s4 1983009808
    %v1118 = vunpack.c.0.s8 %v1117
    %v1119 = vlaneseq
    %v1120 = vshrl.u32 %v1119, 7
    %v1121 = vsub.s32 %v1118, %v1120
    %v1122 = vrot.slane %v1108, %v1121
    %v1123 = vcombine.low %v334, %v382
    %v1124 = vcombine.high %v334, %v382
    %v1126 = vunpack.c.l.s4 1983009808
    %v1127 = vunpack.c.0.s8 %v1126
    %v1128 = vlaneseq
    %v1129 = vshrl.u32 %v1128, 7
    %v1130 = vsub.s32 %v1127, %v1129
    %v1131 = vrot.slane %v1123, %v1130
    %v1133 = vunpack.c.l.s4 1983009808
    %v1134 = vunpack.c.0.s8 %v1133
    %v1135 = vlaneseq
    %v1136 = vshrl.u32 %v1135, 7
    %v1137 = vsub.s32 %v1134, %v1136
    %v1138 = vrot.slane %v1124, %v1137
    %v1139 = vcombine.low %v1083, %v1099
    %v1140 = vcombine.high %v1083, %v1099
    %v1142 = vunpack.c.l.s4 1934713408
    %v1143 = vunpack.c.0.s8 %v1142
    %v1144 = vlaneseq
    %v1145 = vshrl.u32 %v1144, 7
    %v1146 = vsub.s32 %v1143, %v1145
    %v1147 = vrot.slane %v1139, %v1146
    %v1149 = vunpack.c.l.s4 1934713408
    %v1150 = vunpack.c.0.s8 %v1149
    %v1151 = vlaneseq
    %v1152 = vshrl.u32 %v1151, 7
    %v1153 = vsub.s32 %v1150, %v1152
    %v1154 = vrot.slane %v1140, %v1153
    %v1155 = vcombine.low %v1090, %v1106
    %v1156 = vcombine.high %v1090, %v1106
    %v1158 = vunpack.c.l.s4 1934713408
    %v1159 = vunpack.c.0.s8 %v1158
    %v1160 = vlaneseq
    %v1161 = vshrl.u32 %v1160, 7
    %v1162 = vsub.s32 %v1159, %v1161
    %v1163 = vrot.slane %v1155, %v1162
    %v1165 = vunpack.c.l.s4 1934713408
    %v1166 = vunpack.c.0.s8 %v1165
    %v1167 = vlaneseq
    %v1168 = vshrl.u32 %v1167, 7
    %v1169 = vsub.s32 %v1166, %v1168
    %v1170 = vrot.slane %v1156, %v1169
    %v1171 = vcombine.low %v1115, %v1131
    %v1172 = vcombine.high %v1115, %v1131
    %v1174 = vunpack.c.l.s4 1934713408
    %v1175 = vunpack.c.0.s8 %v1174
    %v1176 = vlaneseq
    %v1177 = vshrl.u32 %v1176, 7
    %v1178 = vsub.s32 %v1175, %v1177
    %v1179 = vrot.slane %v1171, %v1178
    %v1181 = vunpack.c.l.s4 1934713408
    %v1182 = vunpack.c.0.s8 %v1181
    %v1183 = vlaneseq
    %v1184 = vshrl.u32 %v1183, 7
    %v1185 = vsub.s32 %v1182, %v1184
    %v1186 = vrot.slane %v1172, %v1185
    %v1187 = vcombine.low %v1122, %v1138
    %v1188 = vcombine.high %v1122, %v1138
    %v1190 = vunpack.c.l.s4 1934713408
    %v1191 = vunpack.c.0.s8 %v1190
    %v1192 = vlaneseq
    %v1193 = vshrl.u32 %v1192, 7
    %v1194 = vsub.s32 %v1191, %v1193
    %v1195 = vrot.slane %v1187, %v1194
    %v1197 = vunpack.c.l.s4 1934713408
    %v1198 = vunpack.c.0.s8 %v1197
    %v1199 = vlaneseq
    %v1200 = vshrl.u32 %v1199, 7
    %v1201 = vsub.s32 %v1198, %v1200
    %v1202 = vrot.slane %v1188, %v1201
    %v1203 = vcombine.low %v1147, %v1179
    %v1204 = vcombine.high %v1147, %v1179
    %v1205 = vcombine.low %v1154, %v1186
    %v1206 = vcombine.high %v1154, %v1186
    %v1207 = vcombine.low %v1163, %v1195
    %v1208 = vcombine.high %v1163, %v1195
    %v1209 = vcombine.low %v1170, %v1202
    %v1210 = vcombine.high %v1170, %v1202
    %v1211 = vcombine.low %v217, %v264
    %v1212 = vcombine.high %v217, %v264
    %v1214 = vunpack.c.l.s4 1983009808
    %v1215 = vunpack.c.0.s8 %v1214
    %v1216 = vlaneseq
    %v1217 = vshrl.u32 %v1216, 7
    %v1218 = vsub.s32 %v1215, %v1217
    %v1219 = vrot.slane %v1211, %v1218
    %v1221 = vunpack.c.l.s4 1983009808
    %v1222 = vunpack.c.0.s8 %v1221
    %v1223 = vlaneseq
    %v1224 = vshrl.u32 %v1223, 7
    %v1225 = vsub.s32 %v1222, %v1224
    %v1226 = vrot.slane %v1212, %v1225
    %v1227 = vcombine.low %v240, %v288
    %v1228 = vcombine.high %v240, %v288
    %v1230 = vunpack.c.l.s4 1983009808
    %v1231 = vunpack.c.0.s8 %v1230
    %v1232 = vlaneseq
    %v1233 = vshrl.u32 %v1232, 7
    %v1234 = vsub.s32 %v1231, %v1233
    %v1235 = vrot.slane %v1227, %v1234
    %v1237 = vunpack.c.l.s4 1983009808
    %v1238 = vunpack.c.0.s8 %v1237
    %v1239 = vlaneseq
    %v1240 = vshrl.u32 %v1239, 7
    %v1241 = vsub.s32 %v1238, %v1240
    %v1242 = vrot.slane %v1228, %v1241
    %v1243 = vcombine.low %v312, %v360
    %v1244 = vcombine.high %v312, %v360
    %v1246 = vunpack.c.l.s4 1983009808
    %v1247 = vunpack.c.0.s8 %v1246
    %v1248 = vlaneseq
    %v1249 = vshrl.u32 %v1248, 7
    %v1250 = vsub.s32 %v1247, %v1249
    %v1251 = vrot.slane %v1243, %v1250
    %v1253 = vunpack.c.l.s4 1983009808
    %v1254 = vunpack.c.0.s8 %v1253
    %v1255 = vlaneseq
    %v1256 = vshrl.u32 %v1255, 7
    %v1257 = vsub.s32 %v1254, %v1256
    %v1258 = vrot.slane %v1244, %v1257
    %v1259 = vcombine.low %v336, %v384
    %v1260 = vcombine.high %v336, %v384
    %v1262 = vunpack.c.l.s4 1983009808
    %v1263 = vunpack.c.0.s8 %v1262
    %v1264 = vlaneseq
    %v1265 = vshrl.u32 %v1264, 7
    %v1266 = vsub.s32 %v1263, %v1265
    %v1267 = vrot.slane %v1259, %v1266
    %v1269 = vunpack.c.l.s4 1983009808
    %v1270 = vunpack.c.0.s8 %v1269
    %v1271 = vlaneseq
    %v1272 = vshrl.u32 %v1271, 7
    %v1273 = vsub.s32 %v1270, %v1272
    %v1274 = vrot.slane %v1260, %v1273
    %v1275 = vcombine.low %v1219, %v1235
    %v1276 = vcombine.high %v1219, %v1235
    %v1278 = vunpack.c.l.s4 1934713408
    %v1279 = vunpack.c.0.s8 %v1278
    %v1280 = vlaneseq
    %v1281 = vshrl.u32 %v1280, 7
    %v1282 = vsub.s32 %v1279, %v1281
    %v1283 = vrot.slane %v1275, %v1282
    %v1285 = vunpack.c.l.s4 1934713408
    %v1286 = vunpack.c.0.s8 %v1285
    %v1287 = vlaneseq
    %v1288 = vshrl.u32 %v1287, 7
    %v1289 = vsub.s32 %v1286, %v1288
    %v1290 = vrot.slane %v1276, %v1289
    %v1291 = vcombine.low %v1226, %v1242
    %v1292 = vcombine.high %v1226, %v1242
    %v1294 = vunpack.c.l.s4 1934713408
    %v1295 = vunpack.c.0.s8 %v1294
    %v1296 = vlaneseq
    %v1297 = vshrl.u32 %v1296, 7
    %v1298 = vsub.s32 %v1295, %v1297
    %v1299 = vrot.slane %v1291, %v1298
    %v1301 = vunpack.c.l.s4 1934713408
    %v1302 = vunpack.c.0.s8 %v1301
    %v1303 = vlaneseq
    %v1304 = vshrl.u32 %v1303, 7
    %v1305 = vsub.s32 %v1302, %v1304
    %v1306 = vrot.slane %v1292, %v1305
    %v1307 = vcombine.low %v1251, %v1267
    %v1308 = vcombine.high %v1251, %v1267
    %v1310 = vunpack.c.l.s4 1934713408
    %v1311 = vunpack.c.0.s8 %v1310
    %v1312 = vlaneseq
    %v1313 = vshrl.u32 %v1312, 7
    %v1314 = vsub.s32 %v1311, %v1313
    %v1315 = vrot.slane %v1307, %v1314
    %v1317 = vunpack.c.l.s4 1934713408
    %v1318 = vunpack.c.0.s8 %v1317
    %v1319 = vlaneseq
    %v1320 = vshrl.u32 %v1319, 7
    %v1321 = vsub.s32 %v1318, %v1320
    %v1322 = vrot.slane %v1308, %v1321
    %v1323 = vcombine.low %v1258, %v1274
    %v1324 = vcombine.high %v1258, %v1274
    %v1326 = vunpack.c.l.s4 1934713408
    %v1327 = vunpack.c.0.s8 %v1326
    %v1328 = vlaneseq
    %v1329 = vshrl.u32 %v1328, 7
    %v1330 = vsub.s32 %v1327, %v1329
    %v1331 = vrot.slane %v1323, %v1330
    %v1333 = vunpack.c.l.s4 1934713408
    %v1334 = vunpack.c.0.s8 %v1333
    %v1335 = vlaneseq
    %v1336 = vshrl.u32 %v1335, 7
    %v1337 = vsub.s32 %v1334, %v1336
    %v1338 = vrot.slane %v1324, %v1337
    %v1339 = vcombine.low %v1283, %v1315
    %v1340 = vcombine.high %v1283, %v1315
    %v1341 = vcombine.low %v1290, %v1322
    %v1342 = vcombine.high %v1290, %v1322
    %v1343 = vcombine.low %v1299, %v1331
    %v1344 = vcombine.high %v1299, %v1331
    %v1345 = vcombine.low %v1306, %v1338
    %v1346 = vcombine.high %v1306, %v1338
    %v1347 = vcombine.low %v218, %v266
    %v1348 = vcombine.high %v218, %v266
    %v1350 = vunpack.c.l.s4 1983009808
    %v1351 = vunpack.c.0.s8 %v1350
    %v1352 = vlaneseq
    %v1353 = vshrl.u32 %v1352, 7
    %v1354 = vsub.s32 %v1351, %v1353
    %v1355 = vrot.slane %v1347, %v1354
    %v1357 = vunpack.c.l.s4 1983009808
    %v1358 = vunpack.c.0.s8 %v1357
    %v1359 = vlaneseq
    %v1360 = vshrl.u32 %v1359, 7
    %v1361 = vsub.s32 %v1358, %v1360
    %v1362 = vrot.slane %v1348, %v1361
    %v1363 = vcombine.low %v242, %v290
    %v1364 = vcombine.high %v242, %v290
    %v1366 = vunpack.c.l.s4 1983009808
    %v1367 = vunpack.c.0.s8 %v1366
    %v1368 = vlaneseq
    %v1369 = vshrl.u32 %v1368, 7
    %v1370 = vsub.s32 %v1367, %v1369
    %v1371 = vrot.slane %v1363, %v1370
    %v1373 = vunpack.c.l.s4 1983009808
    %v1374 = vunpack.c.0.s8 %v1373
    %v1375 = vlaneseq
    %v1376 = vshrl.u32 %v1375, 7
    %v1377 = vsub.s32 %v1374, %v1376
    %v1378 = vrot.slane %v1364, %v1377
    %v1379 = vcombine.low %v314, %v362
    %v1380 = vcombine.high %v314, %v362
    %v1382 = vunpack.c.l.s4 1983009808
    %v1383 = vunpack.c.0.s8 %v1382
    %v1384 = vlaneseq
    %v1385 = vshrl.u32 %v1384, 7
    %v1386 = vsub.s32 %v1383, %v1385
    %v1387 = vrot.slane %v1379, %v1386
    %v1389 = vunpack.c.l.s4 1983009808
    %v1390 = vunpack.c.0.s8 %v1389
    %v1391 = vlaneseq
    %v1392 = vshrl.u32 %v1391, 7
    %v1393 = vsub.s32 %v1390, %v1392
    %v1394 = vrot.slane %v1380, %v1393
    %v1395 = vcombine.low %v338, %v386
    %v1396 = vcombine.high %v338, %v386
    %v1398 = vunpack.c.l.s4 1983009808
    %v1399 = vunpack.c.0.s8 %v1398
    %v1400 = vlaneseq
    %v1401 = vshrl.u32 %v1400, 7
    %v1402 = vsub.s32 %v1399, %v1401
    %v1403 = vrot.slane %v1395, %v1402
    %v1405 = vunpack.c.l.s4 1983009808
    %v1406 = vunpack.c.0.s8 %v1405
    %v1407 = vlaneseq
    %v1408 = vshrl.u32 %v1407, 7
    %v1409 = vsub.s32 %v1406, %v1408
    %v1410 = vrot.slane %v1396, %v1409
    %v1411 = vcombine.low %v1355, %v1371
    %v1412 = vcombine.high %v1355, %v1371
    %v1414 = vunpack.c.l.s4 1934713408
    %v1415 = vunpack.c.0.s8 %v1414
    %v1416 = vlaneseq
    %v1417 = vshrl.u32 %v1416, 7
    %v1418 = vsub.s32 %v1415, %v1417
    %v1419 = vrot.slane %v1411, %v1418
    %v1421 = vunpack.c.l.s4 1934713408
    %v1422 = vunpack.c.0.s8 %v1421
    %v1423 = vlaneseq
    %v1424 = vshrl.u32 %v1423, 7
    %v1425 = vsub.s32 %v1422, %v1424
    %v1426 = vrot.slane %v1412, %v1425
    %v1427 = vcombine.low %v1362, %v1378
    %v1428 = vcombine.high %v1362, %v1378
    %v1430 = vunpack.c.l.s4 1934713408
    %v1431 = vunpack.c.0.s8 %v1430
    %v1432 = vlaneseq
    %v1433 = vshrl.u32 %v1432, 7
    %v1434 = vsub.s32 %v1431, %v1433
    %v1435 = vrot.slane %v1427, %v1434
    %v1437 = vunpack.c.l.s4 1934713408
    %v1438 = vunpack.c.0.s8 %v1437
    %v1439 = vlaneseq
    %v1440 = vshrl.u32 %v1439, 7
    %v1441 = vsub.s32 %v1438, %v1440
    %v1442 = vrot.slane %v1428, %v1441
    %v1443 = vcombine.low %v1387, %v1403
    %v1444 = vcombine.high %v1387, %v1403
    %v1446 = vunpack.c.l.s4 1934713408
    %v1447 = vunpack.c.0.s8 %v1446
    %v1448 = vlaneseq
    %v1449 = vshrl.u32 %v1448, 7
    %v1450 = vsub.s32 %v1447, %v1449
    %v1451 = vrot.slane %v1443, %v1450
    %v1453 = vunpack.c.l.s4 1934713408
    %v1454 = vunpack.c.0.s8 %v1453
    %v1455 = vlaneseq
    %v1456 = vshrl.u32 %v1455, 7
    %v1457 = vsub.s32 %v1454, %v1456
    %v1458 = vrot.slane %v1444, %v1457
    %v1459 = vcombine.low %v1394, %v1410
    %v1460 = vcombine.high %v1394, %v1410
    %v1462 = vunpack.c.l.s4 1934713408
    %v1463 = vunpack.c.0.s8 %v1462
    %v1464 = vlaneseq
    %v1465 = vshrl.u32 %v1464, 7
    %v1466 = vsub.s32 %v1463, %v1465
    %v1467 = vrot.slane %v1459, %v1466
    %v1469 = vunpack.c.l.s4 1934713408
    %v1470 = vunpack.c.0.s8 %v1469
    %v1471 = vlaneseq
    %v1472 = vshrl.u32 %v1471, 7
    %v1473 = vsub.s32 %v1470, %v1472
    %v1474 = vrot.slane %v1460, %v1473
    %v1475 = vcombine.low %v1419, %v1451
    %v1476 = vcombine.high %v1419, %v1451
    %v1477 = vcombine.low %v1426, %v1458
    %v1478 = vcombine.high %v1426, %v1458
    %v1479 = vcombine.low %v1435, %v1467
    %v1480 = vcombine.high %v1435, %v1467
    %v1481 = vcombine.low %v1442, %v1474
    %v1482 = vcombine.high %v1442, %v1474
    %1547 = vrot.lane.b32.xlu0 %v523, 127
    %v1548 = vpop.permute.xlu0 %1547
    %1549 = vrot.lane.b32.xlu0 %v524, 127
    %v1550 = vpop.permute.xlu0 %1549
    %1551 = vrot.lane.b32.xlu0 %v525, 127
    %v1552 = vpop.permute.xlu0 %1551
    %1553 = vrot.lane.b32.xlu0 %v526, 127
    %v1554 = vpop.permute.xlu0 %1553
    %1555 = vrot.lane.b32.xlu0 %v527, 127
    %v1556 = vpop.permute.xlu0 %1555
    %1557 = vrot.lane.b32.xlu0 %v528, 127
    %v1558 = vpop.permute.xlu0 %1557
    %1559 = vrot.lane.b32.xlu0 %v529, 127
    %v1560 = vpop.permute.xlu0 %1559
    %1561 = vrot.lane.b32.xlu0 %v530, 127
    %v1562 = vpop.permute.xlu0 %1561
    %1563 = vrot.lane.b32.xlu0 %v659, 127
    %v1564 = vpop.permute.xlu0 %1563
    %1565 = vrot.lane.b32.xlu0 %v660, 127
    %v1566 = vpop.permute.xlu0 %1565
    %1567 = vrot.lane.b32.xlu0 %v661, 127
    %v1568 = vpop.permute.xlu0 %1567
    %1569 = vrot.lane.b32.xlu0 %v662, 127
    %v1570 = vpop.permute.xlu0 %1569
    %1571 = vrot.lane.b32.xlu0 %v663, 127
    %v1572 = vpop.permute.xlu0 %1571
    %1573 = vrot.lane.b32.xlu0 %v664, 127
    %v1574 = vpop.permute.xlu0 %1573
    %1575 = vrot.lane.b32.xlu0 %v665, 127
    %v1576 = vpop.permute.xlu0 %1575
    %1577 = vrot.lane.b32.xlu0 %v666, 127
    %v1578 = vpop.permute.xlu0 %1577
    %1579 = vrot.lane.b32.xlu0 %v795, 127
    %v1580 = vpop.permute.xlu0 %1579
    %1581 = vrot.lane.b32.xlu0 %v796, 127
    %v1582 = vpop.permute.xlu0 %1581
    %1583 = vrot.lane.b32.xlu0 %v797, 127
    %v1584 = vpop.permute.xlu0 %1583
    %1585 = vrot.lane.b32.xlu0 %v798, 127
    %v1586 = vpop.permute.xlu0 %1585
    %1587 = vrot.lane.b32.xlu0 %v799, 127
    %v1588 = vpop.permute.xlu0 %1587
    %1589 = vrot.lane.b32.xlu0 %v800, 127
    %v1590 = vpop.permute.xlu0 %1589
    %1591 = vrot.lane.b32.xlu0 %v801, 127
    %v1592 = vpop.permute.xlu0 %1591
    %1593 = vrot.lane.b32.xlu0 %v802, 127
    %v1594 = vpop.permute.xlu0 %1593
    %1595 = vrot.lane.b32.xlu0 %v931, 127
    %v1596 = vpop.permute.xlu0 %1595
    %1597 = vrot.lane.b32.xlu0 %v932, 127
    %v1598 = vpop.permute.xlu0 %1597
    %1599 = vrot.lane.b32.xlu0 %v933, 127
    %v1600 = vpop.permute.xlu0 %1599
    %1601 = vrot.lane.b32.xlu0 %v934, 127
    %v1602 = vpop.permute.xlu0 %1601
    %1603 = vrot.lane.b32.xlu0 %v935, 127
    %v1604 = vpop.permute.xlu0 %1603
    %1605 = vrot.lane.b32.xlu0 %v936, 127
    %v1606 = vpop.permute.xlu0 %1605
    %1607 = vrot.lane.b32.xlu0 %v937, 127
    %v1608 = vpop.permute.xlu0 %1607
    %1609 = vrot.lane.b32.xlu0 %v938, 127
    %v1610 = vpop.permute.xlu0 %1609
    %1611 = vrot.lane.b32.xlu0 %v1067, 127
    %v1612 = vpop.permute.xlu0 %1611
    %1613 = vrot.lane.b32.xlu0 %v1068, 127
    %v1614 = vpop.permute.xlu0 %1613
    %1615 = vrot.lane.b32.xlu0 %v1069, 127
    %v1616 = vpop.permute.xlu0 %1615
    %1617 = vrot.lane.b32.xlu0 %v1070, 127
    %v1618 = vpop.permute.xlu0 %1617
    %1619 = vrot.lane.b32.xlu0 %v1071, 127
    %v1620 = vpop.permute.xlu0 %1619
    %1621 = vrot.lane.b32.xlu0 %v1072, 127
    %v1622 = vpop.permute.xlu0 %1621
    %1623 = vrot.lane.b32.xlu0 %v1073, 127
    %v1624 = vpop.permute.xlu0 %1623
    %1625 = vrot.lane.b32.xlu0 %v1074, 127
    %v1626 = vpop.permute.xlu0 %1625
    %1627 = vrot.lane.b32.xlu0 %v1203, 127
    %v1628 = vpop.permute.xlu0 %1627
    %1629 = vrot.lane.b32.xlu0 %v1204, 127
    %v1630 = vpop.permute.xlu0 %1629
    %1631 = vrot.lane.b32.xlu0 %v1205, 127
    %v1632 = vpop.permute.xlu0 %1631
    %1633 = vrot.lane.b32.xlu0 %v1206, 127
    %v1634 = vpop.permute.xlu0 %1633
    %1635 = vrot.lane.b32.xlu0 %v1207, 127
    %v1636 = vpop.permute.xlu0 %1635
    %1637 = vrot.lane.b32.xlu0 %v1208, 127
    %v1638 = vpop.permute.xlu0 %1637
    %1639 = vrot.lane.b32.xlu0 %v1209, 127
    %v1640 = vpop.permute.xlu0 %1639
    %1641 = vrot.lane.b32.xlu0 %v1210, 127
    %v1642 = vpop.permute.xlu0 %1641
    %1643 = vrot.lane.b32.xlu0 %v1339, 127
    %v1644 = vpop.permute.xlu0 %1643
    %1645 = vrot.lane.b32.xlu0 %v1340, 127
    %v1646 = vpop.permute.xlu0 %1645
    %1647 = vrot.lane.b32.xlu0 %v1341, 127
    %v1648 = vpop.permute.xlu0 %1647
    %1649 = vrot.lane.b32.xlu0 %v1342, 127
    %v1650 = vpop.permute.xlu0 %1649
    %1651 = vrot.lane.b32.xlu0 %v1343, 127
    %v1652 = vpop.permute.xlu0 %1651
    %1653 = vrot.lane.b32.xlu0 %v1344, 127
    %v1654 = vpop.permute.xlu0 %1653
    %1655 = vrot.lane.b32.xlu0 %v1345, 127
    %v1656 = vpop.permute.xlu0 %1655
    %1657 = vrot.lane.b32.xlu0 %v1346, 127
    %v1658 = vpop.permute.xlu0 %1657
    %1659 = vrot.lane.b32.xlu0 %v1475, 127
    %v1660 = vpop.permute.xlu0 %1659
    %1661 = vrot.lane.b32.xlu0 %v1476, 127
    %v1662 = vpop.permute.xlu0 %1661
    %1663 = vrot.lane.b32.xlu0 %v1477, 127
    %v1664 = vpop.permute.xlu0 %1663
    %1665 = vrot.lane.b32.xlu0 %v1478, 127
    %v1666 = vpop.permute.xlu0 %1665
    %1667 = vrot.lane.b32.xlu0 %v1479, 127
    %v1668 = vpop.permute.xlu0 %1667
    %1669 = vrot.lane.b32.xlu0 %v1480, 127
    %v1670 = vpop.permute.xlu0 %1669
    %1671 = vrot.lane.b32.xlu0 %v1481, 127
    %v1672 = vpop.permute.xlu0 %1671
    %1673 = vrot.lane.b32.xlu0 %v1482, 127
    %v1674 = vpop.permute.xlu0 %1673
    %v1739 = vmax.f32 %v523, %v1548
    %v1740 = vmax.f32 %v524, %v1550
    %v1741 = vmax.f32 %v525, %v1552
    %v1742 = vmax.f32 %v526, %v1554
    %v1743 = vmax.f32 %v527, %v1556
    %v1744 = vmax.f32 %v528, %v1558
    %v1745 = vmax.f32 %v529, %v1560
    %v1746 = vmax.f32 %v530, %v1562
    %v1747 = vmax.f32 %v659, %v1564
    %v1748 = vmax.f32 %v660, %v1566
    %v1749 = vmax.f32 %v661, %v1568
    %v1750 = vmax.f32 %v662, %v1570
    %v1751 = vmax.f32 %v663, %v1572
    %v1752 = vmax.f32 %v664, %v1574
    %v1753 = vmax.f32 %v665, %v1576
    %v1754 = vmax.f32 %v666, %v1578
    %v1755 = vmax.f32 %v795, %v1580
    %v1756 = vmax.f32 %v796, %v1582
    %v1757 = vmax.f32 %v797, %v1584
    %v1758 = vmax.f32 %v798, %v1586
    %v1759 = vmax.f32 %v799, %v1588
    %v1760 = vmax.f32 %v800, %v1590
    %v1761 = vmax.f32 %v801, %v1592
    %v1762 = vmax.f32 %v802, %v1594
    %v1763 = vmax.f32 %v931, %v1596
    %v1764 = vmax.f32 %v932, %v1598
    %v1765 = vmax.f32 %v933, %v1600
    %v1766 = vmax.f32 %v934, %v1602
    %v1767 = vmax.f32 %v935, %v1604
    %v1768 = vmax.f32 %v936, %v1606
    %v1769 = vmax.f32 %v937, %v1608
    %v1770 = vmax.f32 %v938, %v1610
    %v1771 = vmax.f32 %v1067, %v1612
    %v1772 = vmax.f32 %v1068, %v1614
    %v1773 = vmax.f32 %v1069, %v1616
    %v1774 = vmax.f32 %v1070, %v1618
    %v1775 = vmax.f32 %v1071, %v1620
    %v1776 = vmax.f32 %v1072, %v1622
    %v1777 = vmax.f32 %v1073, %v1624
    %v1778 = vmax.f32 %v1074, %v1626
    %v1779 = vmax.f32 %v1203, %v1628
    %v1780 = vmax.f32 %v1204, %v1630
    %v1781 = vmax.f32 %v1205, %v1632
    %v1782 = vmax.f32 %v1206, %v1634
    %v1783 = vmax.f32 %v1207, %v1636
    %v1784 = vmax.f32 %v1208, %v1638
    %v1785 = vmax.f32 %v1209, %v1640
    %v1786 = vmax.f32 %v1210, %v1642
    %v1787 = vmax.f32 %v1339, %v1644
    %v1788 = vmax.f32 %v1340, %v1646
    %v1789 = vmax.f32 %v1341, %v1648
    %v1790 = vmax.f32 %v1342, %v1650
    %v1791 = vmax.f32 %v1343, %v1652
    %v1792 = vmax.f32 %v1344, %v1654
    %v1793 = vmax.f32 %v1345, %v1656
    %v1794 = vmax.f32 %v1346, %v1658
    %v1795 = vmax.f32 %v1475, %v1660
    %v1796 = vmax.f32 %v1476, %v1662
    %v1797 = vmax.f32 %v1477, %v1664
    %v1798 = vmax.f32 %v1478, %v1666
    %v1799 = vmax.f32 %v1479, %v1668
    %v1800 = vmax.f32 %v1480, %v1670
    %v1801 = vmax.f32 %v1481, %v1672
    %v1802 = vmax.f32 %v1482, %v1674
    %1867 = vset.pattern.permute.xlu0 0
    %1868 = vperm.xlu0 %1867, %v1739
    %v1869 = vpop.permute.xlu0 %1868
    %1870 = vset.pattern.permute.xlu0 0
    %1871 = vperm.xlu0 %1870, %v1740
    %v1872 = vpop.permute.xlu0 %1871
    %1873 = vset.pattern.permute.xlu0 0
    %1874 = vperm.xlu0 %1873, %v1741
    %v1875 = vpop.permute.xlu0 %1874
    %1876 = vset.pattern.permute.xlu0 0
    %1877 = vperm.xlu0 %1876, %v1742
    %v1878 = vpop.permute.xlu0 %1877
    %1879 = vset.pattern.permute.xlu0 0
    %1880 = vperm.xlu0 %1879, %v1743
    %v1881 = vpop.permute.xlu0 %1880
    %1882 = vset.pattern.permute.xlu0 0
    %1883 = vperm.xlu0 %1882, %v1744
    %v1884 = vpop.permute.xlu0 %1883
    %1885 = vset.pattern.permute.xlu0 0
    %1886 = vperm.xlu0 %1885, %v1745
    %v1887 = vpop.permute.xlu0 %1886
    %1888 = vset.pattern.permute.xlu0 0
    %1889 = vperm.xlu0 %1888, %v1746
    %v1890 = vpop.permute.xlu0 %1889
    %1891 = vset.pattern.permute.xlu0 0
    %1892 = vperm.xlu0 %1891, %v1747
    %v1893 = vpop.permute.xlu0 %1892
    %1894 = vset.pattern.permute.xlu0 0
    %1895 = vperm.xlu0 %1894, %v1748
    %v1896 = vpop.permute.xlu0 %1895
    %1897 = vset.pattern.permute.xlu0 0
    %1898 = vperm.xlu0 %1897, %v1749
    %v1899 = vpop.permute.xlu0 %1898
    %1900 = vset.pattern.permute.xlu0 0
    %1901 = vperm.xlu0 %1900, %v1750
    %v1902 = vpop.permute.xlu0 %1901
    %1903 = vset.pattern.permute.xlu0 0
    %1904 = vperm.xlu0 %1903, %v1751
    %v1905 = vpop.permute.xlu0 %1904
    %1906 = vset.pattern.permute.xlu0 0
    %1907 = vperm.xlu0 %1906, %v1752
    %v1908 = vpop.permute.xlu0 %1907
    %1909 = vset.pattern.permute.xlu0 0
    %1910 = vperm.xlu0 %1909, %v1753
    %v1911 = vpop.permute.xlu0 %1910
    %1912 = vset.pattern.permute.xlu0 0
    %1913 = vperm.xlu0 %1912, %v1754
    %v1914 = vpop.permute.xlu0 %1913
    %1915 = vset.pattern.permute.xlu0 0
    %1916 = vperm.xlu0 %1915, %v1755
    %v1917 = vpop.permute.xlu0 %1916
    %1918 = vset.pattern.permute.xlu0 0
    %1919 = vperm.xlu0 %1918, %v1756
    %v1920 = vpop.permute.xlu0 %1919
    %1921 = vset.pattern.permute.xlu0 0
    %1922 = vperm.xlu0 %1921, %v1757
    %v1923 = vpop.permute.xlu0 %1922
    %1924 = vset.pattern.permute.xlu0 0
    %1925 = vperm.xlu0 %1924, %v1758
    %v1926 = vpop.permute.xlu0 %1925
    %1927 = vset.pattern.permute.xlu0 0
    %1928 = vperm.xlu0 %1927, %v1759
    %v1929 = vpop.permute.xlu0 %1928
    %1930 = vset.pattern.permute.xlu0 0
    %1931 = vperm.xlu0 %1930, %v1760
    %v1932 = vpop.permute.xlu0 %1931
    %1933 = vset.pattern.permute.xlu0 0
    %1934 = vperm.xlu0 %1933, %v1761
    %v1935 = vpop.permute.xlu0 %1934
    %1936 = vset.pattern.permute.xlu0 0
    %1937 = vperm.xlu0 %1936, %v1762
    %v1938 = vpop.permute.xlu0 %1937
    %1939 = vset.pattern.permute.xlu0 0
    %1940 = vperm.xlu0 %1939, %v1763
    %v1941 = vpop.permute.xlu0 %1940
    %1942 = vset.pattern.permute.xlu0 0
    %1943 = vperm.xlu0 %1942, %v1764
    %v1944 = vpop.permute.xlu0 %1943
    %1945 = vset.pattern.permute.xlu0 0
    %1946 = vperm.xlu0 %1945, %v1765
    %v1947 = vpop.permute.xlu0 %1946
    %1948 = vset.pattern.permute.xlu0 0
    %1949 = vperm.xlu0 %1948, %v1766
    %v1950 = vpop.permute.xlu0 %1949
    %1951 = vset.pattern.permute.xlu0 0
    %1952 = vperm.xlu0 %1951, %v1767
    %v1953 = vpop.permute.xlu0 %1952
    %1954 = vset.pattern.permute.xlu0 0
    %1955 = vperm.xlu0 %1954, %v1768
    %v1956 = vpop.permute.xlu0 %1955
    %1957 = vset.pattern.permute.xlu0 0
    %1958 = vperm.xlu0 %1957, %v1769
    %v1959 = vpop.permute.xlu0 %1958
    %1960 = vset.pattern.permute.xlu0 0
    %1961 = vperm.xlu0 %1960, %v1770
    %v1962 = vpop.permute.xlu0 %1961
    %1963 = vset.pattern.permute.xlu0 0
    %1964 = vperm.xlu0 %1963, %v1771
    %v1965 = vpop.permute.xlu0 %1964
    %1966 = vset.pattern.permute.xlu0 0
    %1967 = vperm.xlu0 %1966, %v1772
    %v1968 = vpop.permute.xlu0 %1967
    %1969 = vset.pattern.permute.xlu0 0
    %1970 = vperm.xlu0 %1969, %v1773
    %v1971 = vpop.permute.xlu0 %1970
    %1972 = vset.pattern.permute.xlu0 0
    %1973 = vperm.xlu0 %1972, %v1774
    %v1974 = vpop.permute.xlu0 %1973
    %1975 = vset.pattern.permute.xlu0 0
    %1976 = vperm.xlu0 %1975, %v1775
    %v1977 = vpop.permute.xlu0 %1976
    %1978 = vset.pattern.permute.xlu0 0
    %1979 = vperm.xlu0 %1978, %v1776
    %v1980 = vpop.permute.xlu0 %1979
    %1981 = vset.pattern.permute.xlu0 0
    %1982 = vperm.xlu0 %1981, %v1777
    %v1983 = vpop.permute.xlu0 %1982
    %1984 = vset.pattern.permute.xlu0 0
    %1985 = vperm.xlu0 %1984, %v1778
    %v1986 = vpop.permute.xlu0 %1985
    %1987 = vset.pattern.permute.xlu0 0
    %1988 = vperm.xlu0 %1987, %v1779
    %v1989 = vpop.permute.xlu0 %1988
    %1990 = vset.pattern.permute.xlu0 0
    %1991 = vperm.xlu0 %1990, %v1780
    %v1992 = vpop.permute.xlu0 %1991
    %1993 = vset.pattern.permute.xlu0 0
    %1994 = vperm.xlu0 %1993, %v1781
    %v1995 = vpop.permute.xlu0 %1994
    %1996 = vset.pattern.permute.xlu0 0
    %1997 = vperm.xlu0 %1996, %v1782
    %v1998 = vpop.permute.xlu0 %1997
    %1999 = vset.pattern.permute.xlu0 0
    %2000 = vperm.xlu0 %1999, %v1783
    %v2001 = vpop.permute.xlu0 %2000
    %2002 = vset.pattern.permute.xlu0 0
    %2003 = vperm.xlu0 %2002, %v1784
    %v2004 = vpop.permute.xlu0 %2003
    %2005 = vset.pattern.permute.xlu0 0
    %2006 = vperm.xlu0 %2005, %v1785
    %v2007 = vpop.permute.xlu0 %2006
    %2008 = vset.pattern.permute.xlu0 0
    %2009 = vperm.xlu0 %2008, %v1786
    %v2010 = vpop.permute.xlu0 %2009
    %2011 = vset.pattern.permute.xlu0 0
    %2012 = vperm.xlu0 %2011, %v1787
    %v2013 = vpop.permute.xlu0 %2012
    %2014 = vset.pattern.permute.xlu0 0
    %2015 = vperm.xlu0 %2014, %v1788
    %v2016 = vpop.permute.xlu0 %2015
    %2017 = vset.pattern.permute.xlu0 0
    %2018 = vperm.xlu0 %2017, %v1789
    %v2019 = vpop.permute.xlu0 %2018
    %2020 = vset.pattern.permute.xlu0 0
    %2021 = vperm.xlu0 %2020, %v1790
    %v2022 = vpop.permute.xlu0 %2021
    %2023 = vset.pattern.permute.xlu0 0
    %2024 = vperm.xlu0 %2023, %v1791
    %v2025 = vpop.permute.xlu0 %2024
    %2026 = vset.pattern.permute.xlu0 0
    %2027 = vperm.xlu0 %2026, %v1792
    %v2028 = vpop.permute.xlu0 %2027
    %2029 = vset.pattern.permute.xlu0 0
    %2030 = vperm.xlu0 %2029, %v1793
    %v2031 = vpop.permute.xlu0 %2030
    %2032 = vset.pattern.permute.xlu0 0
    %2033 = vperm.xlu0 %2032, %v1794
    %v2034 = vpop.permute.xlu0 %2033
    %2035 = vset.pattern.permute.xlu0 0
    %2036 = vperm.xlu0 %2035, %v1795
    %v2037 = vpop.permute.xlu0 %2036
    %2038 = vset.pattern.permute.xlu0 0
    %2039 = vperm.xlu0 %2038, %v1796
    %v2040 = vpop.permute.xlu0 %2039
    %2041 = vset.pattern.permute.xlu0 0
    %2042 = vperm.xlu0 %2041, %v1797
    %v2043 = vpop.permute.xlu0 %2042
    %2044 = vset.pattern.permute.xlu0 0
    %2045 = vperm.xlu0 %2044, %v1798
    %v2046 = vpop.permute.xlu0 %2045
    %2047 = vset.pattern.permute.xlu0 0
    %2048 = vperm.xlu0 %2047, %v1799
    %v2049 = vpop.permute.xlu0 %2048
    %2050 = vset.pattern.permute.xlu0 0
    %2051 = vperm.xlu0 %2050, %v1800
    %v2052 = vpop.permute.xlu0 %2051
    %2053 = vset.pattern.permute.xlu0 0
    %2054 = vperm.xlu0 %2053, %v1801
    %v2055 = vpop.permute.xlu0 %2054
    %2056 = vset.pattern.permute.xlu0 0
    %2057 = vperm.xlu0 %2056, %v1802
    %v2058 = vpop.permute.xlu0 %2057
    %v2059 = vlaneseq
    %v2060 = vand.u32 %v2059, 127
    %v2061 = vlaneseq
    %v2062 = vshrl.u32 %v2061, 7
    %v2063 = vsub.s32 %v2060, %v2062
    %v2064 = vrot.slane %v1869, %v2063
    %v2065 = vlaneseq
    %v2066 = vshrl.u32 %v2065, 7
    %v2067 = vsub.s32 %v2060, %v2066
    %v2068 = vrot.slane %v1872, %v2067
    %v2069 = vlaneseq
    %v2070 = vshrl.u32 %v2069, 7
    %v2071 = vsub.s32 %v2060, %v2070
    %v2072 = vrot.slane %v1875, %v2071
    %v2073 = vlaneseq
    %v2074 = vshrl.u32 %v2073, 7
    %v2075 = vsub.s32 %v2060, %v2074
    %v2076 = vrot.slane %v1878, %v2075
    %v2077 = vlaneseq
    %v2078 = vshrl.u32 %v2077, 7
    %v2079 = vsub.s32 %v2060, %v2078
    %v2080 = vrot.slane %v1881, %v2079
    %v2081 = vlaneseq
    %v2082 = vshrl.u32 %v2081, 7
    %v2083 = vsub.s32 %v2060, %v2082
    %v2084 = vrot.slane %v1884, %v2083
    %v2085 = vlaneseq
    %v2086 = vshrl.u32 %v2085, 7
    %v2087 = vsub.s32 %v2060, %v2086
    %v2088 = vrot.slane %v1887, %v2087
    %v2089 = vlaneseq
    %v2090 = vshrl.u32 %v2089, 7
    %v2091 = vsub.s32 %v2060, %v2090
    %v2092 = vrot.slane %v1890, %v2091
    %v2093 = vlaneseq
    %v2094 = vshrl.u32 %v2093, 7
    %v2095 = vsub.s32 %v2060, %v2094
    %v2096 = vrot.slane %v1893, %v2095
    %v2097 = vlaneseq
    %v2098 = vshrl.u32 %v2097, 7
    %v2099 = vsub.s32 %v2060, %v2098
    %v2100 = vrot.slane %v1896, %v2099
    %v2101 = vlaneseq
    %v2102 = vshrl.u32 %v2101, 7
    %v2103 = vsub.s32 %v2060, %v2102
    %v2104 = vrot.slane %v1899, %v2103
    %v2105 = vlaneseq
    %v2106 = vshrl.u32 %v2105, 7
    %v2107 = vsub.s32 %v2060, %v2106
    %v2108 = vrot.slane %v1902, %v2107
    %v2109 = vlaneseq
    %v2110 = vshrl.u32 %v2109, 7
    %v2111 = vsub.s32 %v2060, %v2110
    %v2112 = vrot.slane %v1905, %v2111
    %v2113 = vlaneseq
    %v2114 = vshrl.u32 %v2113, 7
    %v2115 = vsub.s32 %v2060, %v2114
    %v2116 = vrot.slane %v1908, %v2115
    %v2117 = vlaneseq
    %v2118 = vshrl.u32 %v2117, 7
    %v2119 = vsub.s32 %v2060, %v2118
    %v2120 = vrot.slane %v1911, %v2119
    %v2121 = vlaneseq
    %v2122 = vshrl.u32 %v2121, 7
    %v2123 = vsub.s32 %v2060, %v2122
    %v2124 = vrot.slane %v1914, %v2123
    %v2125 = vlaneseq
    %v2126 = vshrl.u32 %v2125, 7
    %v2127 = vsub.s32 %v2060, %v2126
    %v2128 = vrot.slane %v1917, %v2127
    %v2129 = vlaneseq
    %v2130 = vshrl.u32 %v2129, 7
    %v2131 = vsub.s32 %v2060, %v2130
    %v2132 = vrot.slane %v1920, %v2131
    %v2133 = vlaneseq
    %v2134 = vshrl.u32 %v2133, 7
    %v2135 = vsub.s32 %v2060, %v2134
    %v2136 = vrot.slane %v1923, %v2135
    %v2137 = vlaneseq
    %v2138 = vshrl.u32 %v2137, 7
    %v2139 = vsub.s32 %v2060, %v2138
    %v2140 = vrot.slane %v1926, %v2139
    %v2141 = vlaneseq
    %v2142 = vshrl.u32 %v2141, 7
    %v2143 = vsub.s32 %v2060, %v2142
    %v2144 = vrot.slane %v1929, %v2143
    %v2145 = vlaneseq
    %v2146 = vshrl.u32 %v2145, 7
    %v2147 = vsub.s32 %v2060, %v2146
    %v2148 = vrot.slane %v1932, %v2147
    %v2149 = vlaneseq
    %v2150 = vshrl.u32 %v2149, 7
    %v2151 = vsub.s32 %v2060, %v2150
    %v2152 = vrot.slane %v1935, %v2151
    %v2153 = vlaneseq
    %v2154 = vshrl.u32 %v2153, 7
    %v2155 = vsub.s32 %v2060, %v2154
    %v2156 = vrot.slane %v1938, %v2155
    %v2157 = vlaneseq
    %v2158 = vshrl.u32 %v2157, 7
    %v2159 = vsub.s32 %v2060, %v2158
    %v2160 = vrot.slane %v1941, %v2159
    %v2161 = vlaneseq
    %v2162 = vshrl.u32 %v2161, 7
    %v2163 = vsub.s32 %v2060, %v2162
    %v2164 = vrot.slane %v1944, %v2163
    %v2165 = vlaneseq
    %v2166 = vshrl.u32 %v2165, 7
    %v2167 = vsub.s32 %v2060, %v2166
    %v2168 = vrot.slane %v1947, %v2167
    %v2169 = vlaneseq
    %v2170 = vshrl.u32 %v2169, 7
    %v2171 = vsub.s32 %v2060, %v2170
    %v2172 = vrot.slane %v1950, %v2171
    %v2173 = vlaneseq
    %v2174 = vshrl.u32 %v2173, 7
    %v2175 = vsub.s32 %v2060, %v2174
    %v2176 = vrot.slane %v1953, %v2175
    %v2177 = vlaneseq
    %v2178 = vshrl.u32 %v2177, 7
    %v2179 = vsub.s32 %v2060, %v2178
    %v2180 = vrot.slane %v1956, %v2179
    %v2181 = vlaneseq
    %v2182 = vshrl.u32 %v2181, 7
    %v2183 = vsub.s32 %v2060, %v2182
    %v2184 = vrot.slane %v1959, %v2183
    %v2185 = vlaneseq
    %v2186 = vshrl.u32 %v2185, 7
    %v2187 = vsub.s32 %v2060, %v2186
    %v2188 = vrot.slane %v1962, %v2187
    %v2189 = vlaneseq
    %v2190 = vshrl.u32 %v2189, 7
    %v2191 = vsub.s32 %v2060, %v2190
    %v2192 = vrot.slane %v1965, %v2191
    %v2193 = vlaneseq
    %v2194 = vshrl.u32 %v2193, 7
    %v2195 = vsub.s32 %v2060, %v2194
    %v2196 = vrot.slane %v1968, %v2195
    %v2197 = vlaneseq
    %v2198 = vshrl.u32 %v2197, 7
    %v2199 = vsub.s32 %v2060, %v2198
    %v2200 = vrot.slane %v1971, %v2199
    %v2201 = vlaneseq
    %v2202 = vshrl.u32 %v2201, 7
    %v2203 = vsub.s32 %v2060, %v2202
    %v2204 = vrot.slane %v1974, %v2203
    %v2205 = vlaneseq
    %v2206 = vshrl.u32 %v2205, 7
    %v2207 = vsub.s32 %v2060, %v2206
    %v2208 = vrot.slane %v1977, %v2207
    %v2209 = vlaneseq
    %v2210 = vshrl.u32 %v2209, 7
    %v2211 = vsub.s32 %v2060, %v2210
    %v2212 = vrot.slane %v1980, %v2211
    %v2213 = vlaneseq
    %v2214 = vshrl.u32 %v2213, 7
    %v2215 = vsub.s32 %v2060, %v2214
    %v2216 = vrot.slane %v1983, %v2215
    %v2217 = vlaneseq
    %v2218 = vshrl.u32 %v2217, 7
    %v2219 = vsub.s32 %v2060, %v2218
    %v2220 = vrot.slane %v1986, %v2219
    %v2221 = vlaneseq
    %v2222 = vshrl.u32 %v2221, 7
    %v2223 = vsub.s32 %v2060, %v2222
    %v2224 = vrot.slane %v1989, %v2223
    %v2225 = vlaneseq
    %v2226 = vshrl.u32 %v2225, 7
    %v2227 = vsub.s32 %v2060, %v2226
    %v2228 = vrot.slane %v1992, %v2227
    %v2229 = vlaneseq
    %v2230 = vshrl.u32 %v2229, 7
    %v2231 = vsub.s32 %v2060, %v2230
    %v2232 = vrot.slane %v1995, %v2231
    %v2233 = vlaneseq
    %v2234 = vshrl.u32 %v2233, 7
    %v2235 = vsub.s32 %v2060, %v2234
    %v2236 = vrot.slane %v1998, %v2235
    %v2237 = vlaneseq
    %v2238 = vshrl.u32 %v2237, 7
    %v2239 = vsub.s32 %v2060, %v2238
    %v2240 = vrot.slane %v2001, %v2239
    %v2241 = vlaneseq
    %v2242 = vshrl.u32 %v2241, 7
    %v2243 = vsub.s32 %v2060, %v2242
    %v2244 = vrot.slane %v2004, %v2243
    %v2245 = vlaneseq
    %v2246 = vshrl.u32 %v2245, 7
    %v2247 = vsub.s32 %v2060, %v2246
    %v2248 = vrot.slane %v2007, %v2247
    %v2249 = vlaneseq
    %v2250 = vshrl.u32 %v2249, 7
    %v2251 = vsub.s32 %v2060, %v2250
    %v2252 = vrot.slane %v2010, %v2251
    %v2253 = vlaneseq
    %v2254 = vshrl.u32 %v2253, 7
    %v2255 = vsub.s32 %v2060, %v2254
    %v2256 = vrot.slane %v2013, %v2255
    %v2257 = vlaneseq
    %v2258 = vshrl.u32 %v2257, 7
    %v2259 = vsub.s32 %v2060, %v2258
    %v2260 = vrot.slane %v2016, %v2259
    %v2261 = vlaneseq
    %v2262 = vshrl.u32 %v2261, 7
    %v2263 = vsub.s32 %v2060, %v2262
    %v2264 = vrot.slane %v2019, %v2263
    %v2265 = vlaneseq
    %v2266 = vshrl.u32 %v2265, 7
    %v2267 = vsub.s32 %v2060, %v2266
    %v2268 = vrot.slane %v2022, %v2267
    %v2269 = vlaneseq
    %v2270 = vshrl.u32 %v2269, 7
    %v2271 = vsub.s32 %v2060, %v2270
    %v2272 = vrot.slane %v2025, %v2271
    %v2273 = vlaneseq
    %v2274 = vshrl.u32 %v2273, 7
    %v2275 = vsub.s32 %v2060, %v2274
    %v2276 = vrot.slane %v2028, %v2275
    %v2277 = vlaneseq
    %v2278 = vshrl.u32 %v2277, 7
    %v2279 = vsub.s32 %v2060, %v2278
    %v2280 = vrot.slane %v2031, %v2279
    %v2281 = vlaneseq
    %v2282 = vshrl.u32 %v2281, 7
    %v2283 = vsub.s32 %v2060, %v2282
    %v2284 = vrot.slane %v2034, %v2283
    %v2285 = vlaneseq
    %v2286 = vshrl.u32 %v2285, 7
    %v2287 = vsub.s32 %v2060, %v2286
    %v2288 = vrot.slane %v2037, %v2287
    %v2289 = vlaneseq
    %v2290 = vshrl.u32 %v2289, 7
    %v2291 = vsub.s32 %v2060, %v2290
    %v2292 = vrot.slane %v2040, %v2291
    %v2293 = vlaneseq
    %v2294 = vshrl.u32 %v2293, 7
    %v2295 = vsub.s32 %v2060, %v2294
    %v2296 = vrot.slane %v2043, %v2295
    %v2297 = vlaneseq
    %v2298 = vshrl.u32 %v2297, 7
    %v2299 = vsub.s32 %v2060, %v2298
    %v2300 = vrot.slane %v2046, %v2299
    %v2301 = vlaneseq
    %v2302 = vshrl.u32 %v2301, 7
    %v2303 = vsub.s32 %v2060, %v2302
    %v2304 = vrot.slane %v2049, %v2303
    %v2305 = vlaneseq
    %v2306 = vshrl.u32 %v2305, 7
    %v2307 = vsub.s32 %v2060, %v2306
    %v2308 = vrot.slane %v2052, %v2307
    %v2309 = vlaneseq
    %v2310 = vshrl.u32 %v2309, 7
    %v2311 = vsub.s32 %v2060, %v2310
    %v2312 = vrot.slane %v2055, %v2311
    %v2313 = vlaneseq
    %v2314 = vshrl.u32 %v2313, 7
    %v2315 = vsub.s32 %v2060, %v2314
    %v2316 = vrot.slane %v2058, %v2315
    %vm2317 = vcmask 1041409
    %v2318 = vsel %vm2317, %v2068, %v2064
    %vm2319 = vcmask 1042434
    %v2320 = vsel %vm2319, %v2072, %v2318
    %vm2321 = vcmask 1043459
    %v2322 = vsel %vm2321, %v2076, %v2320
    %vm2323 = vcmask 1044484
    %v2324 = vsel %vm2323, %v2080, %v2322
    %vm2325 = vcmask 1045509
    %v2326 = vsel %vm2325, %v2084, %v2324
    %vm2327 = vcmask 1046534
    %v2328 = vsel %vm2327, %v2088, %v2326
    %vm2329 = vcmask 1047559
    %v2330 = vsel %vm2329, %v2092, %v2328
    %v2331 = vsel %vm2317, %v2100, %v2096
    %v2332 = vsel %vm2319, %v2104, %v2331
    %v2333 = vsel %vm2321, %v2108, %v2332
    %v2334 = vsel %vm2323, %v2112, %v2333
    %v2335 = vsel %vm2325, %v2116, %v2334
    %v2336 = vsel %vm2327, %v2120, %v2335
    %v2337 = vsel %vm2329, %v2124, %v2336
    %v2338 = vsel %vm2317, %v2132, %v2128
    %v2339 = vsel %vm2319, %v2136, %v2338
    %v2340 = vsel %vm2321, %v2140, %v2339
    %v2341 = vsel %vm2323, %v2144, %v2340
    %v2342 = vsel %vm2325, %v2148, %v2341
    %v2343 = vsel %vm2327, %v2152, %v2342
    %v2344 = vsel %vm2329, %v2156, %v2343
    %v2345 = vsel %vm2317, %v2164, %v2160
    %v2346 = vsel %vm2319, %v2168, %v2345
    %v2347 = vsel %vm2321, %v2172, %v2346
    %v2348 = vsel %vm2323, %v2176, %v2347
    %v2349 = vsel %vm2325, %v2180, %v2348
    %v2350 = vsel %vm2327, %v2184, %v2349
    %v2351 = vsel %vm2329, %v2188, %v2350
    %v2352 = vsel %vm2317, %v2196, %v2192
    %v2353 = vsel %vm2319, %v2200, %v2352
    %v2354 = vsel %vm2321, %v2204, %v2353
    %v2355 = vsel %vm2323, %v2208, %v2354
    %v2356 = vsel %vm2325, %v2212, %v2355
    %v2357 = vsel %vm2327, %v2216, %v2356
    %v2358 = vsel %vm2329, %v2220, %v2357
    %v2359 = vsel %vm2317, %v2228, %v2224
    %v2360 = vsel %vm2319, %v2232, %v2359
    %v2361 = vsel %vm2321, %v2236, %v2360
    %v2362 = vsel %vm2323, %v2240, %v2361
    %v2363 = vsel %vm2325, %v2244, %v2362
    %v2364 = vsel %vm2327, %v2248, %v2363
    %v2365 = vsel %vm2329, %v2252, %v2364
    %v2366 = vsel %vm2317, %v2260, %v2256
    %v2367 = vsel %vm2319, %v2264, %v2366
    %v2368 = vsel %vm2321, %v2268, %v2367
    %v2369 = vsel %vm2323, %v2272, %v2368
    %v2370 = vsel %vm2325, %v2276, %v2369
    %v2371 = vsel %vm2327, %v2280, %v2370
    %v2372 = vsel %vm2329, %v2284, %v2371
    %v2373 = vsel %vm2317, %v2292, %v2288
    %v2374 = vsel %vm2319, %v2296, %v2373
    %v2375 = vsel %vm2321, %v2300, %v2374
    %v2376 = vsel %vm2323, %v2304, %v2375
    %v2377 = vsel %vm2325, %v2308, %v2376
    %v2378 = vsel %vm2327, %v2312, %v2377
    %v2379 = vsel %vm2329, %v2316, %v2378
    %v2388 = vcombine.low %v2330, %v2344
    %v2389 = vcombine.high %v2330, %v2344
    %v2391 = vunpack.c.l.s4 1983009808
    %v2392 = vunpack.c.0.s8 %v2391
    %v2393 = vlaneseq
    %v2394 = vshrl.u32 %v2393, 7
    %v2395 = vsub.s32 %v2392, %v2394
    %v2396 = vrot.slane %v2388, %v2395
    %v2398 = vunpack.c.l.s4 1983009808
    %v2399 = vunpack.c.0.s8 %v2398
    %v2400 = vlaneseq
    %v2401 = vshrl.u32 %v2400, 7
    %v2402 = vsub.s32 %v2399, %v2401
    %v2403 = vrot.slane %v2389, %v2402
    %v2404 = vcombine.low %v2337, %v2351
    %v2405 = vcombine.high %v2337, %v2351
    %v2407 = vunpack.c.l.s4 1983009808
    %v2408 = vunpack.c.0.s8 %v2407
    %v2409 = vlaneseq
    %v2410 = vshrl.u32 %v2409, 7
    %v2411 = vsub.s32 %v2408, %v2410
    %v2412 = vrot.slane %v2404, %v2411
    %v2414 = vunpack.c.l.s4 1983009808
    %v2415 = vunpack.c.0.s8 %v2414
    %v2416 = vlaneseq
    %v2417 = vshrl.u32 %v2416, 7
    %v2418 = vsub.s32 %v2415, %v2417
    %v2419 = vrot.slane %v2405, %v2418
    %v2420 = vcombine.low %v2358, %v2372
    %v2421 = vcombine.high %v2358, %v2372
    %v2423 = vunpack.c.l.s4 1983009808
    %v2424 = vunpack.c.0.s8 %v2423
    %v2425 = vlaneseq
    %v2426 = vshrl.u32 %v2425, 7
    %v2427 = vsub.s32 %v2424, %v2426
    %v2428 = vrot.slane %v2420, %v2427
    %v2430 = vunpack.c.l.s4 1983009808
    %v2431 = vunpack.c.0.s8 %v2430
    %v2432 = vlaneseq
    %v2433 = vshrl.u32 %v2432, 7
    %v2434 = vsub.s32 %v2431, %v2433
    %v2435 = vrot.slane %v2421, %v2434
    %v2436 = vcombine.low %v2365, %v2379
    %v2437 = vcombine.high %v2365, %v2379
    %v2439 = vunpack.c.l.s4 1983009808
    %v2440 = vunpack.c.0.s8 %v2439
    %v2441 = vlaneseq
    %v2442 = vshrl.u32 %v2441, 7
    %v2443 = vsub.s32 %v2440, %v2442
    %v2444 = vrot.slane %v2436, %v2443
    %v2446 = vunpack.c.l.s4 1983009808
    %v2447 = vunpack.c.0.s8 %v2446
    %v2448 = vlaneseq
    %v2449 = vshrl.u32 %v2448, 7
    %v2450 = vsub.s32 %v2447, %v2449
    %v2451 = vrot.slane %v2437, %v2450
    %v2452 = vcombine.low %v2396, %v2412
    %v2453 = vcombine.high %v2396, %v2412
    %v2455 = vunpack.c.l.s4 1934713408
    %v2456 = vunpack.c.0.s8 %v2455
    %v2457 = vlaneseq
    %v2458 = vshrl.u32 %v2457, 7
    %v2459 = vsub.s32 %v2456, %v2458
    %v2460 = vrot.slane %v2452, %v2459
    %v2462 = vunpack.c.l.s4 1934713408
    %v2463 = vunpack.c.0.s8 %v2462
    %v2464 = vlaneseq
    %v2465 = vshrl.u32 %v2464, 7
    %v2466 = vsub.s32 %v2463, %v2465
    %v2467 = vrot.slane %v2453, %v2466
    %v2468 = vcombine.low %v2403, %v2419
    %v2469 = vcombine.high %v2403, %v2419
    %v2471 = vunpack.c.l.s4 1934713408
    %v2472 = vunpack.c.0.s8 %v2471
    %v2473 = vlaneseq
    %v2474 = vshrl.u32 %v2473, 7
    %v2475 = vsub.s32 %v2472, %v2474
    %v2476 = vrot.slane %v2468, %v2475
    %v2478 = vunpack.c.l.s4 1934713408
    %v2479 = vunpack.c.0.s8 %v2478
    %v2480 = vlaneseq
    %v2481 = vshrl.u32 %v2480, 7
    %v2482 = vsub.s32 %v2479, %v2481
    %v2483 = vrot.slane %v2469, %v2482
    %v2484 = vcombine.low %v2428, %v2444
    %v2485 = vcombine.high %v2428, %v2444
    %v2487 = vunpack.c.l.s4 1934713408
    %v2488 = vunpack.c.0.s8 %v2487
    %v2489 = vlaneseq
    %v2490 = vshrl.u32 %v2489, 7
    %v2491 = vsub.s32 %v2488, %v2490
    %v2492 = vrot.slane %v2484, %v2491
    %v2494 = vunpack.c.l.s4 1934713408
    %v2495 = vunpack.c.0.s8 %v2494
    %v2496 = vlaneseq
    %v2497 = vshrl.u32 %v2496, 7
    %v2498 = vsub.s32 %v2495, %v2497
    %v2499 = vrot.slane %v2485, %v2498
    %v2500 = vcombine.low %v2435, %v2451
    %v2501 = vcombine.high %v2435, %v2451
    %v2503 = vunpack.c.l.s4 1934713408
    %v2504 = vunpack.c.0.s8 %v2503
    %v2505 = vlaneseq
    %v2506 = vshrl.u32 %v2505, 7
    %v2507 = vsub.s32 %v2504, %v2506
    %v2508 = vrot.slane %v2500, %v2507
    %v2510 = vunpack.c.l.s4 1934713408
    %v2511 = vunpack.c.0.s8 %v2510
    %v2512 = vlaneseq
    %v2513 = vshrl.u32 %v2512, 7
    %v2514 = vsub.s32 %v2511, %v2513
    %v2515 = vrot.slane %v2501, %v2514
    %v2516 = vcombine.low %v2460, %v2492
    %v2517 = vcombine.high %v2460, %v2492
    %v2518 = vcombine.low %v2467, %v2499
    %v2519 = vcombine.high %v2467, %v2499
    %v2520 = vcombine.low %v2476, %v2508
    %v2521 = vcombine.high %v2476, %v2508
    %v2522 = vcombine.low %v2483, %v2515
    %v2523 = vcombine.high %v2483, %v2515
    %2525 = vrot.lane.b32.xlu0 %v2517, 8
    %v2526 = vpop.permute.xlu0 %2525
    %2529 = vrot.lane.b32.xlu0 %v2518, 16
    %v2530 = vpop.permute.xlu0 %2529
    %2533 = vrot.lane.b32.xlu0 %v2519, 24
    %v2534 = vpop.permute.xlu0 %2533
    %2537 = vrot.lane.b32.xlu0 %v2520, 32
    %v2538 = vpop.permute.xlu0 %2537
    %2541 = vrot.lane.b32.xlu0 %v2521, 40
    %v2542 = vpop.permute.xlu0 %2541
    %2545 = vrot.lane.b32.xlu0 %v2522, 48
    %v2546 = vpop.permute.xlu0 %2545
    %2549 = vrot.lane.b32.xlu0 %v2523, 56
    %v2550 = vpop.permute.xlu0 %2549
    %vm2552 = vcmask 64512
    %v2553 = vsel %vm2552, %v2516, %v2526
    %vm2554 = vcmask 130048
    %v2555 = vsel %vm2554, %v2553, %v2530
    %vm2556 = vcmask 195584
    %v2557 = vsel %vm2556, %v2555, %v2534
    %vm2558 = vcmask 261120
    %v2559 = vsel %vm2558, %v2557, %v2538
    %vm2560 = vcmask 326656
    %v2561 = vsel %vm2560, %v2559, %v2542
    %vm2562 = vcmask 392192
    %v2563 = vsel %vm2562, %v2561, %v2546
    %vm2564 = vcmask 457728
    %v2565 = vsel %vm2564, %v2563, %v2550
    %vm2566 = vcmask 523264
    %2567 = vst.msk [vmem:[#allocation5] sm:$0xff] %vm2566, %v2565
    // Predicated region
    $region10: #{tpu_custom_call.1} parent=1 // pred_check
      _
    $region11: #{tpu_custom_call.1} parent=1 // pred_check_branch
      %2569 = sbr.rel (0) target = $region13
    $region12: #{tpu_custom_call.1} parent=1 // pred_region
      %s2571 = ssub.s32 128, 128
      %2572 = vsyncadd [#allocation4], %s2571
      %s2574 = sshll.u32 [#allocation5], 4
      %s2575 = int_to_ptr.vmem [resolvable:$true] %s2574
      %2577 = dma.vmem_to_hbm [thread:$0]  %s2575, 128, %s1, [#allocation4]
    $region13: #{tpu_custom_call.1} parent=1 // pred_fallthru
      _
    // Predicated region
    $region14: #{tpu_custom_call.1} parent=1 // pred_check
      _
    $region15: #{tpu_custom_call.1} parent=1 // pred_check_branch
      %2579 = sbr.rel (0) target = $region17
    $region16: #{tpu_custom_call.1} parent=1 // pred_region
      %2580 = dma.done [#allocation4], 128
    $region17: #{tpu_custom_call.1} parent=1 // pred_fallthru
      _
    %2581 = vsyncpa [#allocation3], 1
    %2582 = vsyncpa [#allocation4], 1

</llo_original>
